<compile_context>
chip_gen: v7x
topology: tpu7x:2x2x1
jax: 0.10.0
libtpu: 0.0.40
codegen_flags: <defaults>
</compile_context>

<pallas_src>
import jax
import jax.numpy as jnp
import numpy as np
from jax import lax
from jax.experimental import pallas as pl
from jax.experimental.pallas import tpu as pltpu

K_PAD = 128  # candidate instance ids [0, K_PAD); lane/MXU aligned


def _make_loss_kernel(dd, skip_background, background_label):
    margin = 2.0 * float(dd)

    def kernel(lab_ref, emb_ref, out_ref):
        lab = lab_ref[...]                              # (1, HW) int32, lane-dense
        emb = emb_ref[...].astype(jnp.float32)          # (C, HW) — cast in-kernel
        hw = lab.shape[-1]

        # One-hot over candidate ids: instances on sublanes, pixels on lanes.
        k_iota = lax.broadcasted_iota(jnp.int32, (K_PAD, hw), 0)
        oh = lab == k_iota                              # (K_PAD, HW) bool
        if skip_background:
            oh = jnp.logical_and(oh, k_iota != background_label)
        one_hot = oh.astype(jnp.float32)

        # Per-instance counts and embedding sums (MXU contraction over HW).
        counts = jnp.sum(one_hot, axis=1, keepdims=True)            # (K_PAD, 1)
        inv_counts = 1.0 / jnp.maximum(counts, 1.0)                  # hoisted, reused
        sums = lax.dot_general(one_hot, emb, (((1,), (1,)), ((), ())),
                               preferred_element_type=jnp.float32)   # (K_PAD, C)
        means = sums * inv_counts                                    # (K_PAD, C)

        # Squared mean norms (both orientations) and the Gram matrix of means.
        m2 = means * means                                           # (K_PAD, C)
        mu_sq_col = jnp.sum(m2, axis=1, keepdims=True)               # (K_PAD, 1)
        ones_c = jnp.ones((1, m2.shape[1]), jnp.float32)
        mu_sq_row = lax.dot_general(ones_c, m2, (((1,), (1,)), ((), ())),
                                    preferred_element_type=jnp.float32)  # (1, K_PAD)
        gram = lax.dot_general(means, means, (((1,), (1,)), ((), ())),
                               preferred_element_type=jnp.float32)   # (K_PAD, K_PAD)

        # Variance term: ||e_p - mu_k|| via the quadratic expansion (clamp >= 0).
        e_sq = jnp.sum(emb * emb, axis=0, keepdims=True)             # (1, HW)
        cross = lax.dot_general(means, emb, (((1,), (0,)), ((), ())),
                                preferred_element_type=jnp.float32)  # (K_PAD, HW)
        d2 = jnp.maximum(mu_sq_col - 2.0 * cross + e_sq, 0.0)
        dist = jnp.sqrt(d2)                                          # (K_PAD, HW) EUP
        var_sums = jnp.sum(dist * one_hot, axis=1, keepdims=True)    # (K_PAD, 1)
        var_loss = jnp.sum(var_sums * inv_counts, axis=0, keepdims=True)  # (1, 1)

        # Presence of each candidate id (background already excluded above).
        present_col = (counts > 0.0).astype(jnp.float32)             # (K_PAD, 1)
        num_clusters = jnp.sum(present_col, axis=0, keepdims=True)   # (1, 1)

        # Pairwise inter-cluster hinge (Gram formulation, upper triangle).
        pd2 = jnp.maximum(mu_sq_col + mu_sq_row - 2.0 * gram, 0.0)
        pd = jnp.sqrt(pd2)                                           # (K_PAD, K_PAD)
        hinge = jnp.square(jnp.maximum(margin - pd, 0.0))
        ii = lax.broadcasted_iota(jnp.int32, (K_PAD, K_PAD), 0)
        jj = lax.broadcasted_iota(jnp.int32, (K_PAD, K_PAD), 1)
        upper_hinge = hinge * (jj > ii).astype(jnp.float32)          # (K_PAD, K_PAD)
        # sum_{i<j} p_i p_j hinge_ij  ==  p^T (upper_hinge @ p), one MXU pass.
        hp = lax.dot_general(upper_hinge, present_col, (((1,), (0,)), ((), ())),
                             preferred_element_type=jnp.float32)     # (K_PAD, 1)
        pair_sum = jnp.sum(hp * present_col, axis=0, keepdims=True)  # (1, 1)
        dist_loss = pair_sum / jnp.maximum(num_clusters - 1.0, 1.0)

        out_ref[...] = (var_loss + dist_loss) / jnp.maximum(num_clusters, 1.0)

    return kernel


def sisdlf_embedding_loss(embedding_space, label, *, dd=2.5,
                          skip_background=True, background_label=0):
    """embedding_space: [B, C, H, W] float, label: [B, 1, H, W] int (ids in [0, 128)).

    Returns the scalar loss (sum of per-image losses / B), matching the torch module.
    """
    B, C, H, W = embedding_space.shape
    HW = H * W

    # Pure views / cheap casts — embedding stays in native layout & dtype for the DMA.
    emb_r = embedding_space.reshape(B, C, HW)
    lab_r = label.reshape(B, 1, HW).astype(jnp.int32)

    kernel = _make_loss_kernel(float(dd), skip_background, background_label)

    per_image = pl.pallas_call(
        kernel,
        out_shape=jax.ShapeDtypeStruct((B, 1, 1), jnp.float32),
        grid_spec=pltpu.PrefetchScalarGridSpec(
            num_scalar_prefetch=0,
            grid=(B,),
            in_specs=[
                pl.BlockSpec((pl.Squeezed(), 1, HW), lambda b: (b, 0, 0)),
                pl.BlockSpec((pl.Squeezed(), C, HW), lambda b: (b, 0, 0)),
            ],
            out_specs=pl.BlockSpec((pl.Squeezed(), 1, 1), lambda b: (b, 0, 0)),
        ),
        compiler_params=pltpu.CompilerParams(
            dimension_semantics=("parallel",),          # batch axis -> megacore on v7x
            vmem_limit_bytes=48 * 1024 * 1024,          # portable: < 64 MiB v7x VMEM
        ),
    )(lab_r, emb_r)

    return jnp.sum(per_image) / B


def _reference_loss(emb, lab, dd=2.5, skip_background=True, background_label=0):
    """Pure NumPy mirror of the PyTorch forward for verification."""
    emb = np.asarray(emb, dtype=np.float32)
    lab = np.asarray(lab)
    B, C, H, W = emb.shape
    total = 0.0
    for i in range(B):
        e = emb[i].transpose(1, 2, 0).reshape(-1, C)
        l = lab[i, 0].reshape(-1)
        instances = np.unique(l)
        means = []
        var_loss = 0.0
        dist_loss = 0.0
        for inst in instances:
            if skip_background and inst == background_label:
                continue
            vecs = e[l == inst]
            mean = vecs.mean(axis=0)
            var_loss += float(np.linalg.norm(vecs - mean, axis=-1).mean())
            means.append(mean)
        means = np.stack(means)
        nc = means.shape[0]
        for a in range(nc):
            for c in range(a + 1, nc):
                d = float(np.linalg.norm(means[a] - means[c]))
                if d < 2 * dd:
                    dist_loss += (2 * dd - d) ** 2 / (nc - 1)
        total += (var_loss + dist_loss) / nc
    return total / B


if __name__ == "__main__":
    key = jax.random.PRNGKey(0)
    k1, k2 = jax.random.split(key)

    B, C, H, W = 2, 32, 16, 16
    NUM_IDS = 6  # label values in [0, NUM_IDS); 0 is background

    emb = jax.random.normal(k1, (B, C, H, W), dtype=jnp.float32)
    lab = jax.random.randint(k2, (B, 1, H, W), 0, NUM_IDS, dtype=jnp.int32)

    loss_fn = jax.jit(lambda e, l: sisdlf_embedding_loss(e, l, dd=2.5))
    loss = jax.block_until_ready(loss_fn(emb, lab))

    ref = _reference_loss(np.asarray(emb), np.asarray(lab), dd=2.5)
    np.testing.assert_allclose(float(loss), float(ref), rtol=1e-3, atol=1e-3)

    print("KERNEL_OK")
</pallas_src>

<mosaic_0001>
module attributes {stable_mosaic.version = 11 : i64} {
  func.func @kernel(%arg0: i32, %arg1: memref<1x1x256xi32, #tpu.memory_space<vmem>>, %arg2: memref<1x32x256xf32, #tpu.memory_space<vmem>>, %arg3: memref<1x1x1xf32, #tpu.memory_space<vmem>>) attributes {dimension_semantics = [#tpu.dimension_semantics<parallel>], iteration_bounds = array<i64: 2>, scalar_prefetch = 0 : i64, scratch_operands = 0 : i64, tpu.core_type = #tpu.core_type<tc>, window_params = [{transform_indices = @transform_0, window_bounds = array<i64: 1, 1, 256>}, {transform_indices = @transform_1, window_bounds = array<i64: 1, 32, 256>}, {transform_indices = @transform_2, window_bounds = array<i64: 1, 1, 1>}]} {
    %c0 = arith.constant 0 : index
    %c0_0 = arith.constant 0 : index
    %c0_1 = arith.constant 0 : index
    %0 = vector.load %arg1[%c0, %c0_0, %c0_1] : memref<1x1x256xi32, #tpu.memory_space<vmem>>, vector<1x1x256xi32>
    %1 = vector.shape_cast %0 : vector<1x1x256xi32> to vector<1x256xi32>
    %c0_2 = arith.constant 0 : index
    %c0_3 = arith.constant 0 : index
    %c0_4 = arith.constant 0 : index
    %2 = vector.load %arg2[%c0_2, %c0_3, %c0_4] : memref<1x32x256xf32, #tpu.memory_space<vmem>>, vector<1x32x256xf32>
    %3 = vector.shape_cast %2 : vector<1x32x256xf32> to vector<32x256xf32>
    %4 = tpu.iota {dimensions = array<i32: 0>} : vector<128x256xi32>
    %5 = vector.broadcast %1 : vector<1x256xi32> to vector<128x256xi32>
    %6 = arith.cmpi eq, %5, %4 : vector<128x256xi32>
    %c0_i32 = arith.constant 0 : i32
    %7 = vector.broadcast %c0_i32 : i32 to vector<128x256xi32>
    %8 = arith.cmpi ne, %4, %7 : vector<128x256xi32>
    %9 = arith.andi %6, %8 : vector<128x256xi1>
    %10 = arith.extui %9 : vector<128x256xi1> to vector<128x256xi32>
    %11 = arith.sitofp %10 : vector<128x256xi32> to vector<128x256xf32>
    %cst = arith.constant dense<0.000000e+00> : vector<128xf32>
    %12 = vector.multi_reduction <add>, %11, %cst [1] : vector<128x256xf32> to vector<128xf32>
    %13 = vector.shape_cast %12 : vector<128xf32> to vector<128x1xf32>
    %cst_5 = arith.constant 1.000000e+00 : f32
    %14 = vector.broadcast %cst_5 : f32 to vector<128x1xf32>
    %15 = arith.maximumf %13, %14 : vector<128x1xf32>
    %cst_6 = arith.constant 1.000000e+00 : f32
    %16 = vector.broadcast %cst_6 : f32 to vector<128x1xf32>
    %17 = arith.divf %16, %15 : vector<128x1xf32>
    %cst_7 = arith.constant dense<0.000000e+00> : vector<128x32xf32>
    %18 = tpu.matmul %11, %3, %cst_7 {dimension_numbers = #tpu.dot_dimension_numbers<[1], [1], [0], [0], [0, 0, 1, 0], [], []>} : vector<128x256xf32>, vector<32x256xf32>, vector<128x32xf32> -> vector<128x32xf32>
    %19 = vector.broadcast %17 : vector<128x1xf32> to vector<128x32xf32>
    %20 = arith.mulf %18, %19 : vector<128x32xf32>
    %21 = arith.mulf %20, %20 : vector<128x32xf32>
    %cst_8 = arith.constant dense<0.000000e+00> : vector<128xf32>
    %22 = vector.multi_reduction <add>, %21, %cst_8 [1] : vector<128x32xf32> to vector<128xf32>
    %23 = vector.shape_cast %22 : vector<128xf32> to vector<128x1xf32>
    %cst_9 = arith.constant 1.000000e+00 : f32
    %24 = vector.broadcast %cst_9 : f32 to vector<1x32xf32>
    %cst_10 = arith.constant dense<0.000000e+00> : vector<1x128xf32>
    %25 = tpu.matmul %24, %21, %cst_10 {dimension_numbers = #tpu.dot_dimension_numbers<[1], [1], [0], [0], [0, 0, 1, 0], [], []>} : vector<1x32xf32>, vector<128x32xf32>, vector<1x128xf32> -> vector<1x128xf32>
    %cst_11 = arith.constant dense<0.000000e+00> : vector<128x128xf32>
    %26 = tpu.matmul %20, %20, %cst_11 {dimension_numbers = #tpu.dot_dimension_numbers<[1], [1], [0], [0], [0, 0, 1, 0], [], []>} : vector<128x32xf32>, vector<128x32xf32>, vector<128x128xf32> -> vector<128x128xf32>
    %27 = arith.mulf %3, %3 : vector<32x256xf32>
    %cst_12 = arith.constant dense<0.000000e+00> : vector<256xf32>
    %28 = vector.multi_reduction <add>, %27, %cst_12 [0] : vector<32x256xf32> to vector<256xf32>
    %29 = vector.shape_cast %28 : vector<256xf32> to vector<1x256xf32>
    %cst_13 = arith.constant dense<0.000000e+00> : vector<128x256xf32>
    %30 = tpu.matmul %20, %3, %cst_13 {dimension_numbers = #tpu.dot_dimension_numbers<[1], [0], [0], [1], [0, 0, 1, 1], [], []>} : vector<128x32xf32>, vector<32x256xf32>, vector<128x256xf32> -> vector<128x256xf32>
    %cst_14 = arith.constant 2.000000e+00 : f32
    %31 = vector.broadcast %cst_14 : f32 to vector<128x256xf32>
    %32 = arith.mulf %31, %30 : vector<128x256xf32>
    %33 = vector.broadcast %23 : vector<128x1xf32> to vector<128x256xf32>
    %34 = arith.subf %33, %32 : vector<128x256xf32>
    %35 = vector.broadcast %29 : vector<1x256xf32> to vector<128x256xf32>
    %36 = arith.addf %34, %35 : vector<128x256xf32>
    %cst_15 = arith.constant 0.000000e+00 : f32
    %37 = vector.broadcast %cst_15 : f32 to vector<128x256xf32>
    %38 = arith.maximumf %36, %37 : vector<128x256xf32>
    %39 = math.sqrt %38 : vector<128x256xf32>
    %40 = arith.mulf %39, %11 : vector<128x256xf32>
    %cst_16 = arith.constant dense<0.000000e+00> : vector<128xf32>
    %41 = vector.multi_reduction <add>, %40, %cst_16 [1] : vector<128x256xf32> to vector<128xf32>
    %42 = vector.shape_cast %41 : vector<128xf32> to vector<128x1xf32>
    %43 = arith.mulf %42, %17 : vector<128x1xf32>
    %cst_17 = arith.constant dense<0.000000e+00> : vector<1xf32>
    %44 = vector.multi_reduction <add>, %43, %cst_17 [0] : vector<128x1xf32> to vector<1xf32>
    %45 = vector.shape_cast %44 : vector<1xf32> to vector<1x1xf32>
    %cst_18 = arith.constant 0.000000e+00 : f32
    %46 = vector.broadcast %cst_18 : f32 to vector<128x1xf32>
    %47 = arith.cmpf ogt, %13, %46 : vector<128x1xf32>
    %48 = arith.extui %47 : vector<128x1xi1> to vector<128x1xi32>
    %49 = arith.sitofp %48 : vector<128x1xi32> to vector<128x1xf32>
    %cst_19 = arith.constant dense<0.000000e+00> : vector<1xf32>
    %50 = vector.multi_reduction <add>, %49, %cst_19 [0] : vector<128x1xf32> to vector<1xf32>
    %51 = vector.shape_cast %50 : vector<1xf32> to vector<1x1xf32>
    %52 = vector.broadcast %23 : vector<128x1xf32> to vector<128x128xf32>
    %53 = vector.broadcast %25 : vector<1x128xf32> to vector<128x128xf32>
    %54 = arith.addf %52, %53 : vector<128x128xf32>
    %cst_20 = arith.constant 2.000000e+00 : f32
    %55 = vector.broadcast %cst_20 : f32 to vector<128x128xf32>
    %56 = arith.mulf %55, %26 : vector<128x128xf32>
    %57 = arith.subf %54, %56 : vector<128x128xf32>
    %cst_21 = arith.constant 0.000000e+00 : f32
    %58 = vector.broadcast %cst_21 : f32 to vector<128x128xf32>
    %59 = arith.maximumf %57, %58 : vector<128x128xf32>
    %60 = math.sqrt %59 : vector<128x128xf32>
    %cst_22 = arith.constant 5.000000e+00 : f32
    %61 = vector.broadcast %cst_22 : f32 to vector<128x128xf32>
    %62 = arith.subf %61, %60 : vector<128x128xf32>
    %cst_23 = arith.constant 0.000000e+00 : f32
    %63 = vector.broadcast %cst_23 : f32 to vector<128x128xf32>
    %64 = arith.maximumf %62, %63 : vector<128x128xf32>
    %65 = arith.mulf %64, %64 : vector<128x128xf32>
    %66 = tpu.iota {dimensions = array<i32: 0>} : vector<128x128xi32>
    %67 = tpu.iota {dimensions = array<i32: 1>} : vector<128x128xi32>
    %68 = arith.cmpi sgt, %67, %66 : vector<128x128xi32>
    %69 = arith.extui %68 : vector<128x128xi1> to vector<128x128xi32>
    %70 = arith.sitofp %69 : vector<128x128xi32> to vector<128x128xf32>
    %71 = arith.mulf %65, %70 : vector<128x128xf32>
    %cst_24 = arith.constant dense<0.000000e+00> : vector<128x1xf32>
    %72 = tpu.matmul %71, %49, %cst_24 {dimension_numbers = #tpu.dot_dimension_numbers<[1], [0], [0], [1], [0, 0, 1, 1], [], []>} : vector<128x128xf32>, vector<128x1xf32>, vector<128x1xf32> -> vector<128x1xf32>
    %73 = arith.mulf %72, %49 : vector<128x1xf32>
    %cst_25 = arith.constant dense<0.000000e+00> : vector<1xf32>
    %74 = vector.multi_reduction <add>, %73, %cst_25 [0] : vector<128x1xf32> to vector<1xf32>
    %75 = vector.shape_cast %74 : vector<1xf32> to vector<1x1xf32>
    %cst_26 = arith.constant 1.000000e+00 : f32
    %76 = vector.broadcast %cst_26 : f32 to vector<1x1xf32>
    %77 = arith.subf %51, %76 : vector<1x1xf32>
    %cst_27 = arith.constant 1.000000e+00 : f32
    %78 = vector.broadcast %cst_27 : f32 to vector<1x1xf32>
    %79 = arith.maximumf %77, %78 : vector<1x1xf32>
    %80 = arith.divf %75, %79 : vector<1x1xf32>
    %81 = arith.addf %45, %80 : vector<1x1xf32>
    %cst_28 = arith.constant 1.000000e+00 : f32
    %82 = vector.broadcast %cst_28 : f32 to vector<1x1xf32>
    %83 = arith.maximumf %51, %82 : vector<1x1xf32>
    %84 = arith.divf %81, %83 : vector<1x1xf32>
    %c0_29 = arith.constant 0 : index
    %c0_30 = arith.constant 0 : index
    %c0_31 = arith.constant 0 : index
    %85 = vector.load %arg3[%c0_29, %c0_30, %c0_31] : memref<1x1x1xf32, #tpu.memory_space<vmem>>, vector<1x1x1xf32>
    %86 = vector.shape_cast %85 : vector<1x1x1xf32> to vector<1x1xf32>
    %87 = vector.shape_cast %84 : vector<1x1xf32> to vector<1x1x1xf32>
    tpu.vector_store %arg3[%c0_29, %c0_30, %c0_31], %87 {strides = array<i32>} : memref<1x1x1xf32, #tpu.memory_space<vmem>>, vector<1x1x1xf32>,
    return
  }
  func.func @transform_0(%arg0: i32) -> (i32, i32, i32) {
    %c0_i32 = arith.constant 0 : i32
    %c0_i32_0 = arith.constant 0 : i32
    %c0_i32_1 = arith.constant 0 : i32
    return %arg0, %c0_i32, %c0_i32_0 : i32, i32, i32
  }
  func.func @transform_1(%arg0: i32) -> (i32, i32, i32) {
    %c0_i32 = arith.constant 0 : i32
    %c0_i32_0 = arith.constant 0 : i32
    %c0_i32_1 = arith.constant 0 : i32
    return %arg0, %c0_i32, %c0_i32_0 : i32, i32, i32
  }
  func.func @transform_2(%arg0: i32) -> (i32, i32, i32) {
    %c0_i32 = arith.constant 0 : i32
    %c0_i32_0 = arith.constant 0 : i32
    %c0_i32_1 = arith.constant 0 : i32
    return %arg0, %c0_i32, %c0_i32_0 : i32, i32, i32
  }
}

</mosaic_0001>

<llo_original>
// kernel: _lambda_.1
$region0: #{_lambda_.1}
  #allocation0 [shape = 'u32[]', space=smem, size = 0x4, offset = 0x4, fixed_abs, tag = 'smem constant byte address 0x4 - core index']
  #allocation1 [shape = 'u32[144,128]{1,0:T(1,128)}', space=vmem, size = 0x12000, scoped, tag = 'internal scratch']
  %s0 = inlined_call_operand.vmem [shape: s32[2,1,256], index: 0, kind: input, shape index: {}]
  %s1 = inlined_call_operand.vmem [shape: f32[2,32,256], index: 1, kind: input, shape index: {}]
  %s2 = inlined_call_operand.vmem [shape: f32[2,1,1], index: 2, kind: output, shape index: {}]
  %s3 = sld [smem:[#allocation0]]
  $region41: #{_lambda_.1} parent=0
    _
  %s5 = ssub.s32 1, %s3
  %s6 = scalar_select 0, %s5, %s3
  loop: start=0, step=1, limit=4
  $region2: #{_lambda_.1} parent=0 // loop_pre_header
    _
  $region3: #{_lambda_.1} parent=0 // loop_header
    %s8 = sphi 0, %s12
    %p9 = scmp.ge.s32.totalorder %s8, 4
    %s18 = sphi 0, %s20
    %s21 = sphi 0, %s18
    %s22 = sphi 0, %s21
    %s38 = sphi 0, %s22
    %s44 = sphi 0, %s46
    %s47 = sphi 0, %s44
    %s48 = sphi 0, %s47
    %s64 = sphi 0, %s48
    %s70 = sphi 0, %s72
    %s73 = sphi 0, %s70
    %s74 = sphi 0, %s73
    %s90 = sphi 0, %s74
  $region4: #{_lambda_.1} parent=0 // loop_header_branch
    %11 = sbr.rel (%p9) target = $region8
  $region5: #{_lambda_.1} parent=0 // loop_body
    %s13 = ssub.s32 %s8, 1
    %s14 = ssub.s32 %s8, 2
    %s15 = sadd.s32 %s8, 1
    %s16 = ssub.s32 %s8, %s15
    %p17 = scmp.eq.s32.totalorder %s16, 0
    %s19 = sadd.s32 %s18, 1
    %s20 = scalar_select %p17, %s18, %s19
    %p23 = pneg %p17
    %p24 = scmp.eq.s32.totalorder %s8, 1
    %p25 = por %p23, %p24
    %p26 = scmp.ne.s32.totalorder %s18, %s21
    %p27 = scmp.eq.s32.totalorder %s8, 0
    %p28 = por %p26, %p27
    %p29 = scmp.ne.s32.totalorder %s18, %s21
    %p30 = scmp.eq.s32.totalorder %s13, 1
    %p31 = por %p29, %p30
    %p32 = scmp.ne.s32.totalorder %s21, %s22
    %p33 = scmp.eq.s32.totalorder %s13, 0
    %p34 = por %p32, %p33
    %p35 = scmp.ne.s32.totalorder %s21, %s22
    %p36 = scmp.eq.s32.totalorder %s14, 1
    %p37 = por %p35, %p36
    %p39 = scmp.ne.s32.totalorder %s22, %s38
    %p40 = scmp.eq.s32.totalorder %s14, 0
    %p41 = por %p39, %p40
    %s42 = ssub.s32 %s8, %s15
    %p43 = scmp.eq.s32.totalorder %s42, 0
    %s45 = sadd.s32 %s44, 1
    %s46 = scalar_select %p43, %s44, %s45
    %p49 = pneg %p43
    %p50 = scmp.eq.s32.totalorder %s8, 1
    %p51 = por %p49, %p50
    %p52 = scmp.ne.s32.totalorder %s44, %s47
    %p53 = scmp.eq.s32.totalorder %s8, 0
    %p54 = por %p52, %p53
    %p55 = scmp.ne.s32.totalorder %s44, %s47
    %p56 = scmp.eq.s32.totalorder %s13, 1
    %p57 = por %p55, %p56
    %p58 = scmp.ne.s32.totalorder %s47, %s48
    %p59 = scmp.eq.s32.totalorder %s13, 0
    %p60 = por %p58, %p59
    %p61 = scmp.ne.s32.totalorder %s47, %s48
    %p62 = scmp.eq.s32.totalorder %s14, 1
    %p63 = por %p61, %p62
    %p65 = scmp.ne.s32.totalorder %s48, %s64
    %p66 = scmp.eq.s32.totalorder %s14, 0
    %p67 = por %p65, %p66
    %s68 = ssub.s32 %s8, %s15
    %p69 = scmp.eq.s32.totalorder %s68, 0
    %s71 = sadd.s32 %s70, 1
    %s72 = scalar_select %p69, %s70, %s71
    %p75 = pneg %p69
    %p76 = scmp.eq.s32.totalorder %s8, 1
    %p77 = por %p75, %p76
    %p78 = scmp.ne.s32.totalorder %s70, %s73
    %p79 = scmp.eq.s32.totalorder %s8, 0
    %p80 = por %p78, %p79
    %p81 = scmp.ne.s32.totalorder %s70, %s73
    %p82 = scmp.eq.s32.totalorder %s13, 1
    %p83 = por %p81, %p82
    %p84 = scmp.ne.s32.totalorder %s73, %s74
    %p85 = scmp.eq.s32.totalorder %s13, 0
    %p86 = por %p84, %p85
    %p87 = scmp.ne.s32.totalorder %s73, %s74
    %p88 = scmp.eq.s32.totalorder %s14, 1
    %p89 = por %p87, %p88
    %p91 = scmp.ne.s32.totalorder %s74, %s90
    %p92 = scmp.eq.s32.totalorder %s14, 0
    %p93 = por %p91, %p92
    %p94 = scmp.le.s32.totalorder 1, %s8
    %p95 = scmp.lt.s32.totalorder %s8, 3
    %p96 = pnand %p94, %p95
    %p97 = pneg %p96
    // Predicated region
    $region9: #{_lambda_.1} parent=5 // pred_check
      _
    $region10: #{_lambda_.1} parent=5 // pred_check_branch
      %99 = sbr.rel (%p96) target = $region12
    $region11: #{_lambda_.1} parent=5 // pred_region
      %s100 = ssub.s32 %s8, 1
    $region12: #{_lambda_.1} parent=5 // pred_fallthru
      _
    %p101 = scmp.lt.s32.totalorder %s8, 2
    // Predicated region
    $region13: #{_lambda_.1} parent=5 // pred_check
      %p102 = pneg %p101
    $region14: #{_lambda_.1} parent=5 // pred_check_branch
      %104 = sbr.rel (%p102) target = $region16
    $region15: #{_lambda_.1} parent=5 // pred_region
      // Predicated region
      $region17: #{_lambda_.1} parent=15 // pred_check
        %p105 = pneg %p28
      $region18: #{_lambda_.1} parent=15 // pred_check_branch
        %107 = sbr.rel (%p105) target = $region20
      $region19: #{_lambda_.1} parent=15 // pred_region
        %p108 = scmp.lt.s32.totalorder %s8, 1
        %s109 = scalar_select %p108, %s8, 1
        %s110 = smul.addr %s109, 2
        %s111 = scalar_lea.vmem %s0, %s110
      $region20: #{_lambda_.1} parent=15 // pred_fallthru
        _
      // Predicated region
      $region21: #{_lambda_.1} parent=15 // pred_check
        %p112 = pneg %p54
      $region22: #{_lambda_.1} parent=15 // pred_check_branch
        %114 = sbr.rel (%p112) target = $region24
      $region23: #{_lambda_.1} parent=15 // pred_region
        %p115 = scmp.lt.s32.totalorder %s8, 1
        %s116 = scalar_select %p115, %s8, 1
        %s117 = smul.addr %s116, 8
        %s118 = smul.addr %s117, 8
        %s119 = scalar_lea.vmem %s1, %s118
      $region24: #{_lambda_.1} parent=15 // pred_fallthru
        _
    $region16: #{_lambda_.1} parent=5 // pred_fallthru
      _
    %p120 = scmp.le.s32.totalorder 1, %s8
    %p121 = scmp.lt.s32.totalorder %s8, 3
    %p122 = pnand %p120, %p121
    %p123 = pneg %p122
    // Predicated region
    $region25: #{_lambda_.1} parent=5 // pred_check
      _
    $region26: #{_lambda_.1} parent=5 // pred_check_branch
      %125 = sbr.rel (%p122) target = $region28
    $region27: #{_lambda_.1} parent=5 // pred_region
      %s126 = ssub.s32 %s8, 1
      %p127 = scmp.lt.s32.totalorder %s13, 1
      %s128 = scalar_select %p127, %s13, 1
      %s129 = smul.addr %s128, 2
      %s130 = scalar_lea.vmem %s0, %s129
      %p131 = pneg %p34
      %p132 = pneg %p31
      %p133 = scmp.lt.s32.totalorder %s13, 1
      %s134 = scalar_select %p133, %s13, 1
      %s135 = smul.addr %s134, 8
      %s136 = smul.addr %s135, 8
      %s137 = scalar_lea.vmem %s1, %s136
      %p138 = pneg %p60
      %p139 = pneg %p57
      %p140 = pneg %p86
      %p141 = pneg %p83
      %p142 = scmp.lt.s32.totalorder %s13, 1
      %s143 = scalar_select %p142, %s13, 1
      %s144 = scalar_lea.vmem %s2, %s143
      %p145 = scmp.lt.s32.totalorder %s13, 1
      %s146 = scalar_select %p145, %s13, 1
      %s147 = smul.addr %s146, 2
      %s148 = scalar_lea.vmem %s0, %s147
      %p149 = scmp.lt.s32.totalorder %s13, 1
      %s150 = scalar_select %p149, %s13, 1
      %s151 = smul.addr %s150, 8
      %s152 = smul.addr %s151, 8
      %s153 = scalar_lea.vmem %s1, %s152
      %p154 = scmp.lt.s32.totalorder %s13, 1
      %s155 = scalar_select %p154, %s13, 1
      %s156 = scalar_lea.vmem %s2, %s155
      %v157 = vld [vmem:[%s148] sm:$0x3]
      %v158 = vld [vmem:[%s153] sm:$0xff]
      %v159 = vld [vmem:[%s153 + $0x8] sm:$0xff]
      %v160 = vld [vmem:[%s153 + $0x10] sm:$0xff]
      %v161 = vld [vmem:[%s153 + $0x18] sm:$0xff]
      %v162 = vld [vmem:[%s153 + $0x20] sm:$0xff]
      %v163 = vld [vmem:[%s153 + $0x28] sm:$0xff]
      %v164 = vld [vmem:[%s153 + $0x30] sm:$0xff]
      %v165 = vld [vmem:[%s153 + $0x38] sm:$0xff]
      %v166 = vlaneseq
      %v167 = vshrl.u32 %v166, 7
      %v168 = vadd.s32 %v167, 8
      %v169 = vadd.s32 %v167, 16
      %v170 = vadd.s32 %v167, 24
      %v171 = vadd.s32 %v167, 32
      %v172 = vadd.s32 %v167, 40
      %v173 = vadd.s32 %v167, 48
      %v174 = vadd.s32 %v167, 56
      %v175 = vadd.s32 %v167, 64
      %v176 = vadd.s32 %v167, 72
      %v177 = vadd.s32 %v167, 80
      %v178 = vadd.s32 %v167, 88
      %v179 = vadd.s32 %v167, 96
      %v180 = vadd.s32 %v167, 104
      %v181 = vadd.s32 %v167, 112
      %v182 = vadd.s32 %v167, 120
      %v183 = vlaneseq
      %v184 = vshrl.u32 %v183, 7
      %v185 = vsub.s32 0, %v184
      %v186 = vrot.slane %v157, %v185
      %v187 = vlaneseq
      %v188 = vshrl.u32 %v187, 7
      %v189 = vsub.s32 1, %v188
      %v190 = vrot.slane %v157, %v189
      %vm191 = vcmp.eq.s32.totalorder %v186, %v167
      %vm192 = vcmp.eq.s32.totalorder %v190, %v167
      %vm193 = vcmp.eq.s32.totalorder %v186, %v168
      %vm194 = vcmp.eq.s32.totalorder %v190, %v168
      %vm195 = vcmp.eq.s32.totalorder %v186, %v169
      %vm196 = vcmp.eq.s32.totalorder %v190, %v169
      %vm197 = vcmp.eq.s32.totalorder %v186, %v170
      %vm198 = vcmp.eq.s32.totalorder %v190, %v170
      %vm199 = vcmp.eq.s32.totalorder %v186, %v171
      %vm200 = vcmp.eq.s32.totalorder %v190, %v171
      %vm201 = vcmp.eq.s32.totalorder %v186, %v172
      %vm202 = vcmp.eq.s32.totalorder %v190, %v172
      %vm203 = vcmp.eq.s32.totalorder %v186, %v173
      %vm204 = vcmp.eq.s32.totalorder %v190, %v173
      %vm205 = vcmp.eq.s32.totalorder %v186, %v174
      %vm206 = vcmp.eq.s32.totalorder %v190, %v174
      %vm207 = vcmp.eq.s32.totalorder %v186, %v175
      %vm208 = vcmp.eq.s32.totalorder %v190, %v175
      %vm209 = vcmp.eq.s32.totalorder %v186, %v176
      %vm210 = vcmp.eq.s32.totalorder %v190, %v176
      %vm211 = vcmp.eq.s32.totalorder %v186, %v177
      %vm212 = vcmp.eq.s32.totalorder %v190, %v177
      %vm213 = vcmp.eq.s32.totalorder %v186, %v178
      %vm214 = vcmp.eq.s32.totalorder %v190, %v178
      %vm215 = vcmp.eq.s32.totalorder %v186, %v179
      %vm216 = vcmp.eq.s32.totalorder %v190, %v179
      %vm217 = vcmp.eq.s32.totalorder %v186, %v180
      %vm218 = vcmp.eq.s32.totalorder %v190, %v180
      %vm219 = vcmp.eq.s32.totalorder %v186, %v181
      %vm220 = vcmp.eq.s32.totalorder %v190, %v181
      %vm221 = vcmp.eq.s32.totalorder %v186, %v182
      %vm222 = vcmp.eq.s32.totalorder %v190, %v182
      %vm223 = vcmp.ne.s32.totalorder %v167, 0
      %vm224 = vcmp.ne.s32.totalorder %v168, 0
      %vm225 = vcmp.ne.s32.totalorder %v169, 0
      %vm226 = vcmp.ne.s32.totalorder %v170, 0
      %vm227 = vcmp.ne.s32.totalorder %v171, 0
      %vm228 = vcmp.ne.s32.totalorder %v172, 0
      %vm229 = vcmp.ne.s32.totalorder %v173, 0
      %vm230 = vcmp.ne.s32.totalorder %v174, 0
      %vm231 = vcmp.ne.s32.totalorder %v175, 0
      %vm232 = vcmp.ne.s32.totalorder %v176, 0
      %vm233 = vcmp.ne.s32.totalorder %v177, 0
      %vm234 = vcmp.ne.s32.totalorder %v178, 0
      %vm235 = vcmp.ne.s32.totalorder %v179, 0
      %vm236 = vcmp.ne.s32.totalorder %v180, 0
      %vm237 = vcmp.ne.s32.totalorder %v181, 0
      %vm238 = vcmp.ne.s32.totalorder %v182, 0
      %vm239 = vmand %vm191, %vm223
      %vm240 = vmand %vm192, %vm223
      %vm241 = vmand %vm193, %vm224
      %vm242 = vmand %vm194, %vm224
      %vm243 = vmand %vm195, %vm225
      %vm244 = vmand %vm196, %vm225
      %vm245 = vmand %vm197, %vm226
      %vm246 = vmand %vm198, %vm226
      %vm247 = vmand %vm199, %vm227
      %vm248 = vmand %vm200, %vm227
      %vm249 = vmand %vm201, %vm228
      %vm250 = vmand %vm202, %vm228
      %vm251 = vmand %vm203, %vm229
      %vm252 = vmand %vm204, %vm229
      %vm253 = vmand %vm205, %vm230
      %vm254 = vmand %vm206, %vm230
      %vm255 = vmand %vm207, %vm231
      %vm256 = vmand %vm208, %vm231
      %vm257 = vmand %vm209, %vm232
      %vm258 = vmand %vm210, %vm232
      %vm259 = vmand %vm211, %vm233
      %vm260 = vmand %vm212, %vm233
      %vm261 = vmand %vm213, %vm234
      %vm262 = vmand %vm214, %vm234
      %vm263 = vmand %vm215, %vm235
      %vm264 = vmand %vm216, %vm235
      %vm265 = vmand %vm217, %vm236
      %vm266 = vmand %vm218, %vm236
      %vm267 = vmand %vm219, %vm237
      %vm268 = vmand %vm220, %vm237
      %vm269 = vmand %vm221, %vm238
      %vm270 = vmand %vm222, %vm238
      %v271 = vsel %vm239, 1, 0
      %v272 = vsel %vm240, 1, 0
      %v273 = vsel %vm241, 1, 0
      %v274 = vsel %vm242, 1, 0
      %v275 = vsel %vm243, 1, 0
      %v276 = vsel %vm244, 1, 0
      %v277 = vsel %vm245, 1, 0
      %v278 = vsel %vm246, 1, 0
      %v279 = vsel %vm247, 1, 0
      %v280 = vsel %vm248, 1, 0
      %v281 = vsel %vm249, 1, 0
      %v282 = vsel %vm250, 1, 0
      %v283 = vsel %vm251, 1, 0
      %v284 = vsel %vm252, 1, 0
      %v285 = vsel %vm253, 1, 0
      %v286 = vsel %vm254, 1, 0
      %v287 = vsel %vm255, 1, 0
      %v288 = vsel %vm256, 1, 0
      %v289 = vsel %vm257, 1, 0
      %v290 = vsel %vm258, 1, 0
      %v291 = vsel %vm259, 1, 0
      %v292 = vsel %vm260, 1, 0
      %v293 = vsel %vm261, 1, 0
      %v294 = vsel %vm262, 1, 0
      %v295 = vsel %vm263, 1, 0
      %v296 = vsel %vm264, 1, 0
      %v297 = vsel %vm265, 1, 0
      %v298 = vsel %vm266, 1, 0
      %v299 = vsel %vm267, 1, 0
      %v300 = vsel %vm268, 1, 0
      %v301 = vsel %vm269, 1, 0
      %v302 = vsel %vm270, 1, 0
      %v303 = vcvt.s32.f32 %v271
      %v304 = vcvt.s32.f32 %v272
      %v305 = vcvt.s32.f32 %v273
      %v306 = vcvt.s32.f32 %v274
      %v307 = vcvt.s32.f32 %v275
      %v308 = vcvt.s32.f32 %v276
      %v309 = vcvt.s32.f32 %v277
      %v310 = vcvt.s32.f32 %v278
      %v311 = vcvt.s32.f32 %v279
      %v312 = vcvt.s32.f32 %v280
      %v313 = vcvt.s32.f32 %v281
      %v314 = vcvt.s32.f32 %v282
      %v315 = vcvt.s32.f32 %v283
      %v316 = vcvt.s32.f32 %v284
      %v317 = vcvt.s32.f32 %v285
      %v318 = vcvt.s32.f32 %v286
      %v319 = vcvt.s32.f32 %v287
      %v320 = vcvt.s32.f32 %v288
      %v321 = vcvt.s32.f32 %v289
      %v322 = vcvt.s32.f32 %v290
      %v323 = vcvt.s32.f32 %v291
      %v324 = vcvt.s32.f32 %v292
      %v325 = vcvt.s32.f32 %v293
      %v326 = vcvt.s32.f32 %v294
      %v327 = vcvt.s32.f32 %v295
      %v328 = vcvt.s32.f32 %v296
      %v329 = vcvt.s32.f32 %v297
      %v330 = vcvt.s32.f32 %v298
      %v331 = vcvt.s32.f32 %v299
      %v332 = vcvt.s32.f32 %v300
      %v333 = vcvt.s32.f32 %v301
      %v334 = vcvt.s32.f32 %v302
      %v335 = vadd.f32 %v303, %v304
      %336 = vadd.xlane.f32.xlu0 %v335
      %v337 = vpop.xlane.xlu0 %336
      %v338 = vadd.f32 %v305, %v306
      %339 = vadd.xlane.f32.xlu0 %v338
      %v340 = vpop.xlane.xlu0 %339
      %v341 = vadd.f32 %v307, %v308
      %342 = vadd.xlane.f32.xlu0 %v341
      %v343 = vpop.xlane.xlu0 %342
      %v344 = vadd.f32 %v309, %v310
      %345 = vadd.xlane.f32.xlu0 %v344
      %v346 = vpop.xlane.xlu0 %345
      %v347 = vadd.f32 %v311, %v312
      %348 = vadd.xlane.f32.xlu0 %v347
      %v349 = vpop.xlane.xlu0 %348
      %v350 = vadd.f32 %v313, %v314
      %351 = vadd.xlane.f32.xlu0 %v350
      %v352 = vpop.xlane.xlu0 %351
      %v353 = vadd.f32 %v315, %v316
      %354 = vadd.xlane.f32.xlu0 %v353
      %v355 = vpop.xlane.xlu0 %354
      %v356 = vadd.f32 %v317, %v318
      %357 = vadd.xlane.f32.xlu0 %v356
      %v358 = vpop.xlane.xlu0 %357
      %v359 = vadd.f32 %v319, %v320
      %360 = vadd.xlane.f32.xlu0 %v359
      %v361 = vpop.xlane.xlu0 %360
      %v362 = vadd.f32 %v321, %v322
      %363 = vadd.xlane.f32.xlu0 %v362
      %v364 = vpop.xlane.xlu0 %363
      %v365 = vadd.f32 %v323, %v324
      %366 = vadd.xlane.f32.xlu0 %v365
      %v367 = vpop.xlane.xlu0 %366
      %v368 = vadd.f32 %v325, %v326
      %369 = vadd.xlane.f32.xlu0 %v368
      %v370 = vpop.xlane.xlu0 %369
      %v371 = vadd.f32 %v327, %v328
      %372 = vadd.xlane.f32.xlu0 %v371
      %v373 = vpop.xlane.xlu0 %372
      %v374 = vadd.f32 %v329, %v330
      %375 = vadd.xlane.f32.xlu0 %v374
      %v376 = vpop.xlane.xlu0 %375
      %v377 = vadd.f32 %v331, %v332
      %378 = vadd.xlane.f32.xlu0 %v377
      %v379 = vpop.xlane.xlu0 %378
      %v380 = vadd.f32 %v333, %v334
      %381 = vadd.xlane.f32.xlu0 %v380
      %v382 = vpop.xlane.xlu0 %381
      %v383 = vmax.f32 %v337, 1.0
      %v384 = vmax.f32 %v340, 1.0
      %v385 = vmax.f32 %v343, 1.0
      %v386 = vmax.f32 %v346, 1.0
      %v387 = vmax.f32 %v349, 1.0
      %v388 = vmax.f32 %v352, 1.0
      %v389 = vmax.f32 %v355, 1.0
      %v390 = vmax.f32 %v358, 1.0
      %v391 = vmax.f32 %v361, 1.0
      %v392 = vmax.f32 %v364, 1.0
      %v393 = vmax.f32 %v367, 1.0
      %v394 = vmax.f32 %v370, 1.0
      %v395 = vmax.f32 %v373, 1.0
      %v396 = vmax.f32 %v376, 1.0
      %v397 = vmax.f32 %v379, 1.0
      %v398 = vmax.f32 %v382, 1.0
      %v399 = vrcp.pop %v383
      %v400 = vmul.f32 1.0, %v399
      %v401 = vrcp.pop %v384
      %v402 = vmul.f32 1.0, %v401
      %v403 = vrcp.pop %v385
      %v404 = vmul.f32 1.0, %v403
      %v405 = vrcp.pop %v386
      %v406 = vmul.f32 1.0, %v405
      %v407 = vrcp.pop %v387
      %v408 = vmul.f32 1.0, %v407
      %v409 = vrcp.pop %v388
      %v410 = vmul.f32 1.0, %v409
      %v411 = vrcp.pop %v389
      %v412 = vmul.f32 1.0, %v411
      %v413 = vrcp.pop %v390
      %v414 = vmul.f32 1.0, %v413
      %v415 = vrcp.pop %v391
      %v416 = vmul.f32 1.0, %v415
      %v417 = vrcp.pop %v392
      %v418 = vmul.f32 1.0, %v417
      %v419 = vrcp.pop %v393
      %v420 = vmul.f32 1.0, %v419
      %v421 = vrcp.pop %v394
      %v422 = vmul.f32 1.0, %v421
      %v423 = vrcp.pop %v395
      %v424 = vmul.f32 1.0, %v423
      %v425 = vrcp.pop %v396
      %v426 = vmul.f32 1.0, %v425
      %v427 = vrcp.pop %v397
      %v428 = vmul.f32 1.0, %v427
      %v429 = vrcp.pop %v398
      %v430 = vmul.f32 1.0, %v429
      %431 = vmatprep.subr.mxu0 %v159
      %432 = vmatpush1.xpose.msra.mxu0 %v158
      %433 = vmatprep.subr.mxu0 %v161
      %434 = vmatpush1.xpose.msra.mxu0 %v160
      %435 = vmatprep.subr.mxu0 %v163
      %436 = vmatpush1.xpose.msra.mxu0 %v162
      %437 = vmatprep.subr.mxu0 %v165
      %438 = vmatpush1.xpose.msra.mxu0 %v164
      %439 = vmatprep.subr.mxu0 0.0
      %440 = vmatpush1.xpose.msra.mxu0 0.0
      %441 = vmatprep.subr.mxu0 0.0
      %442 = vmatpush1.xpose.msra.mxu0 0.0
      %443 = vmatprep.subr.mxu0 0.0
      %444 = vmatpush1.xpose.msra.mxu0 0.0
      %445 = vmatprep.subr.mxu0 0.0
      %446 = vmatpush1.xpose.msra.mxu0 0.0
      %447 = vmatprep.subr.mxu0 0.0
      %448 = vmatpush1.xpose.msra.mxu0 0.0
      %449 = vmatprep.subr.mxu0 0.0
      %450 = vmatpush1.xpose.msra.mxu0 0.0
      %451 = vmatprep.subr.mxu0 0.0
      %452 = vmatpush1.xpose.msra.mxu0 0.0
      %453 = vmatprep.subr.mxu0 0.0
      %454 = vmatpush1.xpose.msra.mxu0 0.0
      %455 = vmatprep.subr.mxu0 0.0
      %456 = vmatpush1.xpose.msra.mxu0 0.0
      %457 = vmatprep.subr.mxu0 0.0
      %458 = vmatpush1.xpose.msra.mxu0 0.0
      %459 = vmatprep.subr.mxu0 0.0
      %460 = vmatpush1.xpose.msra.mxu0 0.0
      %461 = vmatprep.subr.mxu0 0.0
      %462 = vmatpush1.xpose.msra.mxu0 0.0
      %463 = vmatprep.subr.mxu0 0.0
      %464 = vmatpush1.xpose.msra.mxu0 0.0
      %465 = vmatprep.subr.mxu0 0.0
      %466 = vmatpush1.xpose.msra.mxu0 0.0
      %467 = vmatprep.subr.mxu0 0.0
      %468 = vmatpush1.xpose.msra.mxu0 0.0
      %469 = vmatprep.subr.mxu0 0.0
      %470 = vmatpush1.xpose.msra.mxu0 0.0
      %471 = vmatprep.subr.mxu0 0.0
      %472 = vmatpush1.xpose.msra.mxu0 0.0
      %473 = vmatprep.subr.mxu0 0.0
      %474 = vmatpush1.xpose.msra.mxu0 0.0
      %475 = vmatprep.subr.mxu0 0.0
      %476 = vmatpush1.xpose.msra.mxu0 0.0
      %477 = vmatprep.subr.mxu0 0.0
      %478 = vmatpush1.xpose.msra.mxu0 0.0
      %479 = vmatprep.subr.mxu0 0.0
      %480 = vmatpush1.xpose.msra.mxu0 0.0
      %481 = vmatprep.subr.mxu0 0.0
      %482 = vmatpush1.xpose.msra.mxu0 0.0
      %483 = vmatprep.subr.mxu0 0.0
      %484 = vmatpush1.xpose.msra.mxu0 0.0
      %485 = vmatprep.subr.mxu0 0.0
      %486 = vmatpush1.xpose.msra.mxu0 0.0
      %487 = vmatprep.subr.mxu0 0.0
      %488 = vmatpush1.xpose.msra.mxu0 0.0
      %489 = vmatprep.subr.mxu0 0.0
      %490 = vmatpush1.xpose.msra.mxu0 0.0
      %491 = vmatprep.subr.mxu0 0.0
      %492 = vmatpush1.xpose.msra.mxu0 0.0
      %493 = vmatprep.subr.mxu0 0.0
      %494 = vmatpush1.xpose.msra.mxu0 0.0
      %495 = vmatprep.mubr.f32.mxu0 %v304
      %496 = vmatmul.mubr.f32.gmra.mrb[0].mxu0 %v303
      %v497 = vpop.f32.mrb[0].mxu0
      %v498 = vadd.f32 0.0, %v497
      %v499 = vpop.f32.mrb[0].mxu0
      %500 = vmatprep.mubr.f32.mxu0 %v306
      %501 = vmatmul.mubr.f32.gmra.mrb[0].mxu0 %v305
      %v502 = vpop.f32.mrb[0].mxu0
      %v503 = vadd.f32 0.0, %v502
      %v504 = vpop.f32.mrb[0].mxu0
      %505 = vmatprep.mubr.f32.mxu0 %v308
      %506 = vmatmul.mubr.f32.gmra.mrb[0].mxu0 %v307
      %v507 = vpop.f32.mrb[0].mxu0
      %v508 = vadd.f32 0.0, %v507
      %v509 = vpop.f32.mrb[0].mxu0
      %510 = vmatprep.mubr.f32.mxu0 %v310
      %511 = vmatmul.mubr.f32.gmra.mrb[0].mxu0 %v309
      %v512 = vpop.f32.mrb[0].mxu0
      %v513 = vadd.f32 0.0, %v512
      %v514 = vpop.f32.mrb[0].mxu0
      %515 = vmatprep.mubr.f32.mxu0 %v312
      %516 = vmatmul.mubr.f32.gmra.mrb[0].mxu0 %v311
      %v517 = vpop.f32.mrb[0].mxu0
      %v518 = vadd.f32 0.0, %v517
      %v519 = vpop.f32.mrb[0].mxu0
      %520 = vmatprep.mubr.f32.mxu0 %v314
      %521 = vmatmul.mubr.f32.gmra.mrb[0].mxu0 %v313
      %v522 = vpop.f32.mrb[0].mxu0
      %v523 = vadd.f32 0.0, %v522
      %v524 = vpop.f32.mrb[0].mxu0
      %525 = vmatprep.mubr.f32.mxu0 %v316
      %526 = vmatmul.mubr.f32.gmra.mrb[0].mxu0 %v315
      %v527 = vpop.f32.mrb[0].mxu0
      %v528 = vadd.f32 0.0, %v527
      %v529 = vpop.f32.mrb[0].mxu0
      %530 = vmatprep.mubr.f32.mxu0 %v318
      %531 = vmatmul.mubr.f32.gmra.mrb[0].mxu0 %v317
      %v532 = vpop.f32.mrb[0].mxu0
      %v533 = vadd.f32 0.0, %v532
      %v534 = vpop.f32.mrb[0].mxu0
      %535 = vmatprep.mubr.f32.mxu0 %v320
      %536 = vmatmul.mubr.f32.gmra.mrb[0].mxu0 %v319
      %v537 = vpop.f32.mrb[0].mxu0
      %v538 = vadd.f32 0.0, %v537
      %v539 = vpop.f32.mrb[0].mxu0
      %540 = vmatprep.mubr.f32.mxu0 %v322
      %541 = vmatmul.mubr.f32.gmra.mrb[0].mxu0 %v321
      %v542 = vpop.f32.mrb[0].mxu0
      %v543 = vadd.f32 0.0, %v542
      %v544 = vpop.f32.mrb[0].mxu0
      %545 = vmatprep.mubr.f32.mxu0 %v324
      %546 = vmatmul.mubr.f32.gmra.mrb[0].mxu0 %v323
      %v547 = vpop.f32.mrb[0].mxu0
      %v548 = vadd.f32 0.0, %v547
      %v549 = vpop.f32.mrb[0].mxu0
      %550 = vmatprep.mubr.f32.mxu0 %v326
      %551 = vmatmul.mubr.f32.gmra.mrb[0].mxu0 %v325
      %v552 = vpop.f32.mrb[0].mxu0
      %v553 = vadd.f32 0.0, %v552
      %v554 = vpop.f32.mrb[0].mxu0
      %555 = vmatprep.mubr.f32.mxu0 %v328
      %556 = vmatmul.mubr.f32.gmra.mrb[0].mxu0 %v327
      %v557 = vpop.f32.mrb[0].mxu0
      %v558 = vadd.f32 0.0, %v557
      %v559 = vpop.f32.mrb[0].mxu0
      %560 = vmatprep.mubr.f32.mxu0 %v330
      %561 = vmatmul.mubr.f32.gmra.mrb[0].mxu0 %v329
      %v562 = vpop.f32.mrb[0].mxu0
      %v563 = vadd.f32 0.0, %v562
      %v564 = vpop.f32.mrb[0].mxu0
      %565 = vmatprep.mubr.f32.mxu0 %v332
      %566 = vmatmul.mubr.f32.gmra.mrb[0].mxu0 %v331
      %v567 = vpop.f32.mrb[0].mxu0
      %v568 = vadd.f32 0.0, %v567
      %v569 = vpop.f32.mrb[0].mxu0
      %570 = vmatprep.mubr.f32.mxu0 %v334
      %571 = vmatmul.mubr.f32.gmra.mrb[0].mxu0 %v333
      %v572 = vpop.f32.mrb[0].mxu0
      %v573 = vadd.f32 0.0, %v572
      %v574 = vpop.f32.mrb[0].mxu0
      %575 = vdwg.mxu0
      %v576 = vmul.f32 %v498, %v400
      %v577 = vmul.f32 %v503, %v402
      %v578 = vmul.f32 %v508, %v404
      %v579 = vmul.f32 %v513, %v406
      %v580 = vmul.f32 %v518, %v408
      %v581 = vmul.f32 %v523, %v410
      %v582 = vmul.f32 %v528, %v412
      %v583 = vmul.f32 %v533, %v414
      %v584 = vmul.f32 %v538, %v416
      %v585 = vmul.f32 %v543, %v418
      %v586 = vmul.f32 %v548, %v420
      %v587 = vmul.f32 %v553, %v422
      %v588 = vmul.f32 %v558, %v424
      %v589 = vmul.f32 %v563, %v426
      %v590 = vmul.f32 %v568, %v428
      %v591 = vmul.f32 %v573, %v430
      %v592 = vmul.f32 %v576, %v576
      %v593 = vmul.f32 %v577, %v577
      %v594 = vmul.f32 %v578, %v578
      %v595 = vmul.f32 %v579, %v579
      %v596 = vmul.f32 %v580, %v580
      %v597 = vmul.f32 %v581, %v581
      %v598 = vmul.f32 %v582, %v582
      %v599 = vmul.f32 %v583, %v583
      %v600 = vmul.f32 %v584, %v584
      %v601 = vmul.f32 %v585, %v585
      %v602 = vmul.f32 %v586, %v586
      %v603 = vmul.f32 %v587, %v587
      %v604 = vmul.f32 %v588, %v588
      %v605 = vmul.f32 %v589, %v589
      %v606 = vmul.f32 %v590, %v590
      %v607 = vmul.f32 %v591, %v591
      %vm608 = vcmask 261120
      %v609 = vsel %vm608, %v592, 0.0
      %610 = vadd.xlane.f32.xlu0 %v609
      %v611 = vpop.xlane.xlu0 %610
      %v612 = vsel %vm608, %v593, 0.0
      %613 = vadd.xlane.f32.xlu0 %v612
      %v614 = vpop.xlane.xlu0 %613
      %v615 = vsel %vm608, %v594, 0.0
      %616 = vadd.xlane.f32.xlu0 %v615
      %v617 = vpop.xlane.xlu0 %616
      %v618 = vsel %vm608, %v595, 0.0
      %619 = vadd.xlane.f32.xlu0 %v618
      %v620 = vpop.xlane.xlu0 %619
      %v621 = vsel %vm608, %v596, 0.0
      %622 = vadd.xlane.f32.xlu0 %v621
      %v623 = vpop.xlane.xlu0 %622
      %v624 = vsel %vm608, %v597, 0.0
      %625 = vadd.xlane.f32.xlu0 %v624
      %v626 = vpop.xlane.xlu0 %625
      %v627 = vsel %vm608, %v598, 0.0
      %628 = vadd.xlane.f32.xlu0 %v627
      %v629 = vpop.xlane.xlu0 %628
      %v630 = vsel %vm608, %v599, 0.0
      %631 = vadd.xlane.f32.xlu0 %v630
      %v632 = vpop.xlane.xlu0 %631
      %v633 = vsel %vm608, %v600, 0.0
      %634 = vadd.xlane.f32.xlu0 %v633
      %v635 = vpop.xlane.xlu0 %634
      %v636 = vsel %vm608, %v601, 0.0
      %637 = vadd.xlane.f32.xlu0 %v636
      %v638 = vpop.xlane.xlu0 %637
      %v639 = vsel %vm608, %v602, 0.0
      %640 = vadd.xlane.f32.xlu0 %v639
      %v641 = vpop.xlane.xlu0 %640
      %v642 = vsel %vm608, %v603, 0.0
      %643 = vadd.xlane.f32.xlu0 %v642
      %v644 = vpop.xlane.xlu0 %643
      %v645 = vsel %vm608, %v604, 0.0
      %646 = vadd.xlane.f32.xlu0 %v645
      %v647 = vpop.xlane.xlu0 %646
      %v648 = vsel %vm608, %v605, 0.0
      %649 = vadd.xlane.f32.xlu0 %v648
      %v650 = vpop.xlane.xlu0 %649
      %v651 = vsel %vm608, %v606, 0.0
      %652 = vadd.xlane.f32.xlu0 %v651
      %v653 = vpop.xlane.xlu0 %652
      %v654 = vsel %vm608, %v607, 0.0
      %655 = vadd.xlane.f32.xlu0 %v654
      %v656 = vpop.xlane.xlu0 %655
      %v658 = vsel %vm608, 1.0, 0
      %v661 = vsel %vm608, %v592, 0
      %v664 = vsel %vm608, %v593, 0
      %v667 = vsel %vm608, %v594, 0
      %v670 = vsel %vm608, %v595, 0
      %v673 = vsel %vm608, %v596, 0
      %v676 = vsel %vm608, %v597, 0
      %v679 = vsel %vm608, %v598, 0
      %v682 = vsel %vm608, %v599, 0
      %v685 = vsel %vm608, %v600, 0
      %v688 = vsel %vm608, %v601, 0
      %v691 = vsel %vm608, %v602, 0
      %v694 = vsel %vm608, %v603, 0
      %v697 = vsel %vm608, %v604, 0
      %v700 = vsel %vm608, %v605, 0
      %v703 = vsel %vm608, %v606, 0
      %v706 = vsel %vm608, %v607, 0
      %708 = vmatprep.subr.mxu0 0.0
      %709 = vmatpush1.xpose.msra.mxu0 %v661
      %710 = vmatprep.subr.mxu0 0.0
      %711 = vmatpush1.xpose.msra.mxu0 %v664
      %712 = vmatprep.subr.mxu0 0.0
      %713 = vmatpush1.xpose.msra.mxu0 %v667
      %714 = vmatprep.subr.mxu0 0.0
      %715 = vmatpush1.xpose.msra.mxu0 %v670
      %716 = vmatprep.subr.mxu0 0.0
      %717 = vmatpush1.xpose.msra.mxu0 %v673
      %718 = vmatprep.subr.mxu0 0.0
      %719 = vmatpush1.xpose.msra.mxu0 %v676
      %720 = vmatprep.subr.mxu0 0.0
      %721 = vmatpush1.xpose.msra.mxu0 %v679
      %722 = vmatprep.subr.mxu0 0.0
      %723 = vmatpush1.xpose.msra.mxu0 %v682
      %724 = vmatprep.subr.mxu0 0.0
      %725 = vmatpush1.xpose.msra.mxu0 %v685
      %726 = vmatprep.subr.mxu0 0.0
      %727 = vmatpush1.xpose.msra.mxu0 %v688
      %728 = vmatprep.subr.mxu0 0.0
      %729 = vmatpush1.xpose.msra.mxu0 %v691
      %730 = vmatprep.subr.mxu0 0.0
      %731 = vmatpush1.xpose.msra.mxu0 %v694
      %732 = vmatprep.subr.mxu0 0.0
      %733 = vmatpush1.xpose.msra.mxu0 %v697
      %734 = vmatprep.subr.mxu0 0.0
      %735 = vmatpush1.xpose.msra.mxu0 %v700
      %736 = vmatprep.subr.mxu0 0.0
      %737 = vmatpush1.xpose.msra.mxu0 %v703
      %738 = vmatprep.subr.mxu0 0.0
      %739 = vmatpush1.xpose.msra.mxu0 %v706
      %740 = vmatprep.subr.mxu0 0.0
      %741 = vmatpush1.xpose.msra.mxu0 0.0
      %742 = vmatprep.subr.mxu0 0.0
      %743 = vmatpush1.xpose.msra.mxu0 0.0
      %744 = vmatprep.subr.mxu0 0.0
      %745 = vmatpush1.xpose.msra.mxu0 0.0
      %746 = vmatprep.subr.mxu0 0.0
      %747 = vmatpush1.xpose.msra.mxu0 0.0
      %748 = vmatprep.subr.mxu0 0.0
      %749 = vmatpush1.xpose.msra.mxu0 0.0
      %750 = vmatprep.subr.mxu0 0.0
      %751 = vmatpush1.xpose.msra.mxu0 0.0
      %752 = vmatprep.subr.mxu0 0.0
      %753 = vmatpush1.xpose.msra.mxu0 0.0
      %754 = vmatprep.subr.mxu0 0.0
      %755 = vmatpush1.xpose.msra.mxu0 0.0
      %756 = vmatprep.subr.mxu0 0.0
      %757 = vmatpush1.xpose.msra.mxu0 0.0
      %758 = vmatprep.subr.mxu0 0.0
      %759 = vmatpush1.xpose.msra.mxu0 0.0
      %760 = vmatprep.subr.mxu0 0.0
      %761 = vmatpush1.xpose.msra.mxu0 0.0
      %762 = vmatprep.subr.mxu0 0.0
      %763 = vmatpush1.xpose.msra.mxu0 0.0
      %764 = vmatprep.subr.mxu0 0.0
      %765 = vmatpush1.xpose.msra.mxu0 0.0
      %766 = vmatprep.subr.mxu0 0.0
      %767 = vmatpush1.xpose.msra.mxu0 0.0
      %768 = vmatprep.subr.mxu0 0.0
      %769 = vmatpush1.xpose.msra.mxu0 0.0
      %770 = vmatprep.subr.mxu0 0.0
      %771 = vmatpush1.xpose.msra.mxu0 0.0
      %772 = vmatprep.mubr.f32.mxu0 0.0
      %773 = vmatmul.mubr.f32.gmra.mrb[0].mxu0 %v658
      %v774 = vpop.f32.mrb[0].mxu0
      %v775 = vadd.f32 0.0, %v774
      %v776 = vpop.f32.mrb[0].mxu0
      %777 = vdwg.mxu0
      %v779 = vsel %vm608, %v576, 0
      %v782 = vsel %vm608, %v577, 0
      %v785 = vsel %vm608, %v578, 0
      %v788 = vsel %vm608, %v579, 0
      %v791 = vsel %vm608, %v580, 0
      %v794 = vsel %vm608, %v581, 0
      %v797 = vsel %vm608, %v582, 0
      %v800 = vsel %vm608, %v583, 0
      %v803 = vsel %vm608, %v584, 0
      %v806 = vsel %vm608, %v585, 0
      %v809 = vsel %vm608, %v586, 0
      %v812 = vsel %vm608, %v587, 0
      %v815 = vsel %vm608, %v588, 0
      %v818 = vsel %vm608, %v589, 0
      %v821 = vsel %vm608, %v590, 0
      %v824 = vsel %vm608, %v591, 0
      %826 = vmatprep.subr.mxu0 0.0
      %827 = vmatpush1.xpose.msra.mxu0 %v779
      %828 = vmatprep.subr.mxu0 0.0
      %829 = vmatpush1.xpose.msra.mxu0 %v782
      %830 = vmatprep.subr.mxu0 0.0
      %831 = vmatpush1.xpose.msra.mxu0 %v785
      %832 = vmatprep.subr.mxu0 0.0
      %833 = vmatpush1.xpose.msra.mxu0 %v788
      %834 = vmatprep.subr.mxu0 0.0
      %835 = vmatpush1.xpose.msra.mxu0 %v791
      %836 = vmatprep.subr.mxu0 0.0
      %837 = vmatpush1.xpose.msra.mxu0 %v794
      %838 = vmatprep.subr.mxu0 0.0
      %839 = vmatpush1.xpose.msra.mxu0 %v797
      %840 = vmatprep.subr.mxu0 0.0
      %841 = vmatpush1.xpose.msra.mxu0 %v800
      %842 = vmatprep.subr.mxu0 0.0
      %843 = vmatpush1.xpose.msra.mxu0 %v803
      %844 = vmatprep.subr.mxu0 0.0
      %845 = vmatpush1.xpose.msra.mxu0 %v806
      %846 = vmatprep.subr.mxu0 0.0
      %847 = vmatpush1.xpose.msra.mxu0 %v809
      %848 = vmatprep.subr.mxu0 0.0
      %849 = vmatpush1.xpose.msra.mxu0 %v812
      %850 = vmatprep.subr.mxu0 0.0
      %851 = vmatpush1.xpose.msra.mxu0 %v815
      %852 = vmatprep.subr.mxu0 0.0
      %853 = vmatpush1.xpose.msra.mxu0 %v818
      %854 = vmatprep.subr.mxu0 0.0
      %855 = vmatpush1.xpose.msra.mxu0 %v821
      %856 = vmatprep.subr.mxu0 0.0
      %857 = vmatpush1.xpose.msra.mxu0 %v824
      %858 = vmatprep.subr.mxu0 0.0
      %859 = vmatpush1.xpose.msra.mxu0 0.0
      %860 = vmatprep.subr.mxu0 0.0
      %861 = vmatpush1.xpose.msra.mxu0 0.0
      %862 = vmatprep.subr.mxu0 0.0
      %863 = vmatpush1.xpose.msra.mxu0 0.0
      %864 = vmatprep.subr.mxu0 0.0
      %865 = vmatpush1.xpose.msra.mxu0 0.0
      %866 = vmatprep.subr.mxu0 0.0
      %867 = vmatpush1.xpose.msra.mxu0 0.0
      %868 = vmatprep.subr.mxu0 0.0
      %869 = vmatpush1.xpose.msra.mxu0 0.0
      %870 = vmatprep.subr.mxu0 0.0
      %871 = vmatpush1.xpose.msra.mxu0 0.0
      %872 = vmatprep.subr.mxu0 0.0
      %873 = vmatpush1.xpose.msra.mxu0 0.0
      %874 = vmatprep.subr.mxu0 0.0
      %875 = vmatpush1.xpose.msra.mxu0 0.0
      %876 = vmatprep.subr.mxu0 0.0
      %877 = vmatpush1.xpose.msra.mxu0 0.0
      %878 = vmatprep.subr.mxu0 0.0
      %879 = vmatpush1.xpose.msra.mxu0 0.0
      %880 = vmatprep.subr.mxu0 0.0
      %881 = vmatpush1.xpose.msra.mxu0 0.0
      %882 = vmatprep.subr.mxu0 0.0
      %883 = vmatpush1.xpose.msra.mxu0 0.0
      %884 = vmatprep.subr.mxu0 0.0
      %885 = vmatpush1.xpose.msra.mxu0 0.0
      %886 = vmatprep.subr.mxu0 0.0
      %887 = vmatpush1.xpose.msra.mxu0 0.0
      %888 = vmatprep.subr.mxu0 0.0
      %889 = vmatpush1.xpose.msra.mxu0 0.0
      %890 = vmatprep.mubr.f32.mxu0 0.0
      %891 = vmatmul.mubr.f32.gmra.mrb[0].mxu0 %v779
      %v892 = vpop.f32.mrb[0].mxu0
      %v893 = vadd.f32 0.0, %v892
      %v894 = vpop.f32.mrb[0].mxu0
      %895 = vmatprep.mubr.f32.mxu0 0.0
      %896 = vmatmul.mubr.f32.gmra.mrb[0].mxu0 %v782
      %v897 = vpop.f32.mrb[0].mxu0
      %v898 = vadd.f32 0.0, %v897
      %v899 = vpop.f32.mrb[0].mxu0
      %900 = vmatprep.mubr.f32.mxu0 0.0
      %901 = vmatmul.mubr.f32.gmra.mrb[0].mxu0 %v785
      %v902 = vpop.f32.mrb[0].mxu0
      %v903 = vadd.f32 0.0, %v902
      %v904 = vpop.f32.mrb[0].mxu0
      %905 = vmatprep.mubr.f32.mxu0 0.0
      %906 = vmatmul.mubr.f32.gmra.mrb[0].mxu0 %v788
      %v907 = vpop.f32.mrb[0].mxu0
      %v908 = vadd.f32 0.0, %v907
      %v909 = vpop.f32.mrb[0].mxu0
      %910 = vmatprep.mubr.f32.mxu0 0.0
      %911 = vmatmul.mubr.f32.gmra.mrb[0].mxu0 %v791
      %v912 = vpop.f32.mrb[0].mxu0
      %v913 = vadd.f32 0.0, %v912
      %v914 = vpop.f32.mrb[0].mxu0
      %915 = vmatprep.mubr.f32.mxu0 0.0
      %916 = vmatmul.mubr.f32.gmra.mrb[0].mxu0 %v794
      %v917 = vpop.f32.mrb[0].mxu0
      %v918 = vadd.f32 0.0, %v917
      %v919 = vpop.f32.mrb[0].mxu0
      %920 = vmatprep.mubr.f32.mxu0 0.0
      %921 = vmatmul.mubr.f32.gmra.mrb[0].mxu0 %v797
      %v922 = vpop.f32.mrb[0].mxu0
      %v923 = vadd.f32 0.0, %v922
      %v924 = vpop.f32.mrb[0].mxu0
      %925 = vmatprep.mubr.f32.mxu0 0.0
      %926 = vmatmul.mubr.f32.gmra.mrb[0].mxu0 %v800
      %v927 = vpop.f32.mrb[0].mxu0
      %v928 = vadd.f32 0.0, %v927
      %v929 = vpop.f32.mrb[0].mxu0
      %930 = vmatprep.mubr.f32.mxu0 0.0
      %931 = vmatmul.mubr.f32.gmra.mrb[0].mxu0 %v803
      %v932 = vpop.f32.mrb[0].mxu0
      %v933 = vadd.f32 0.0, %v932
      %v934 = vpop.f32.mrb[0].mxu0
      %935 = vmatprep.mubr.f32.mxu0 0.0
      %936 = vmatmul.mubr.f32.gmra.mrb[0].mxu0 %v806
      %v937 = vpop.f32.mrb[0].mxu0
      %v938 = vadd.f32 0.0, %v937
      %v939 = vpop.f32.mrb[0].mxu0
      %940 = vmatprep.mubr.f32.mxu0 0.0
      %941 = vmatmul.mubr.f32.gmra.mrb[0].mxu0 %v809
      %v942 = vpop.f32.mrb[0].mxu0
      %v943 = vadd.f32 0.0, %v942
      %v944 = vpop.f32.mrb[0].mxu0
      %945 = vmatprep.mubr.f32.mxu0 0.0
      %946 = vmatmul.mubr.f32.gmra.mrb[0].mxu0 %v812
      %v947 = vpop.f32.mrb[0].mxu0
      %v948 = vadd.f32 0.0, %v947
      %v949 = vpop.f32.mrb[0].mxu0
      %950 = vmatprep.mubr.f32.mxu0 0.0
      %951 = vmatmul.mubr.f32.gmra.mrb[0].mxu0 %v815
      %v952 = vpop.f32.mrb[0].mxu0
      %v953 = vadd.f32 0.0, %v952
      %v954 = vpop.f32.mrb[0].mxu0
      %955 = vmatprep.mubr.f32.mxu0 0.0
      %956 = vmatmul.mubr.f32.gmra.mrb[0].mxu0 %v818
      %v957 = vpop.f32.mrb[0].mxu0
      %v958 = vadd.f32 0.0, %v957
      %v959 = vpop.f32.mrb[0].mxu0
      %960 = vmatprep.mubr.f32.mxu0 0.0
      %961 = vmatmul.mubr.f32.gmra.mrb[0].mxu0 %v821
      %v962 = vpop.f32.mrb[0].mxu0
      %v963 = vadd.f32 0.0, %v962
      %v964 = vpop.f32.mrb[0].mxu0
      %965 = vmatprep.mubr.f32.mxu0 0.0
      %966 = vmatmul.mubr.f32.gmra.mrb[0].mxu0 %v824
      %v967 = vpop.f32.mrb[0].mxu0
      %v968 = vadd.f32 0.0, %v967
      %v969 = vpop.f32.mrb[0].mxu0
      %970 = vdwg.mxu0
      %v971 = vmul.f32 %v158, %v158
      %v972 = vmul.f32 %v159, %v159
      %v973 = vmul.f32 %v160, %v160
      %v974 = vmul.f32 %v161, %v161
      %v975 = vmul.f32 %v162, %v162
      %v976 = vmul.f32 %v163, %v163
      %v977 = vmul.f32 %v164, %v164
      %v978 = vmul.f32 %v165, %v165
      %v979 = vadd.f32 %v971, %v973
      %v980 = vadd.f32 %v979, %v975
      %v981 = vadd.f32 %v980, %v977
      %v982 = vrot.slane %v981, 4
      %v983 = vadd.f32 %v981, %v982
      %v984 = vrot.slane %v983, 2
      %v985 = vadd.f32 %v983, %v984
      %v986 = vrot.slane %v985, 1
      %v987 = vadd.f32 %v985, %v986
      %v988 = vadd.f32 %v972, %v974
      %v989 = vadd.f32 %v988, %v976
      %v990 = vadd.f32 %v989, %v978
      %v991 = vrot.slane %v990, 4
      %v992 = vadd.f32 %v990, %v991
      %v993 = vrot.slane %v992, 2
      %v994 = vadd.f32 %v992, %v993
      %v995 = vrot.slane %v994, 1
      %v996 = vadd.f32 %v994, %v995
      %997 = vmatprep.subr.mxu0 %v159
      %998 = vmatpush1.msra.mxu0 %v158
      %999 = vmatprep.subr.mxu0 %v161
      %1000 = vmatpush1.msra.mxu0 %v160
      %1001 = vmatprep.subr.mxu0 %v163
      %1002 = vmatpush1.msra.mxu0 %v162
      %1003 = vmatprep.subr.mxu0 %v165
      %1004 = vmatpush1.msra.mxu0 %v164
      %1005 = vmatprep.subr.mxu0 0.0
      %1006 = vmatpush1.msra.mxu0 0.0
      %1007 = vmatprep.subr.mxu0 0.0
      %1008 = vmatpush1.msra.mxu0 0.0
      %1009 = vmatprep.subr.mxu0 0.0
      %1010 = vmatpush1.msra.mxu0 0.0
      %1011 = vmatprep.subr.mxu0 0.0
      %1012 = vmatpush1.msra.mxu0 0.0
      %1013 = vmatprep.subr.mxu0 0.0
      %1014 = vmatpush1.msra.mxu0 0.0
      %1015 = vmatprep.subr.mxu0 0.0
      %1016 = vmatpush1.msra.mxu0 0.0
      %1017 = vmatprep.subr.mxu0 0.0
      %1018 = vmatpush1.msra.mxu0 0.0
      %1019 = vmatprep.subr.mxu0 0.0
      %1020 = vmatpush1.msra.mxu0 0.0
      %1021 = vmatprep.subr.mxu0 0.0
      %1022 = vmatpush1.msra.mxu0 0.0
      %1023 = vmatprep.subr.mxu0 0.0
      %1024 = vmatpush1.msra.mxu0 0.0
      %1025 = vmatprep.subr.mxu0 0.0
      %1026 = vmatpush1.msra.mxu0 0.0
      %1027 = vmatprep.subr.mxu0 0.0
      %1028 = vmatpush1.msra.mxu0 0.0
      %1029 = vmatprep.subr.mxu0 0.0
      %1030 = vmatpush1.msra.mxu0 0.0
      %1031 = vmatprep.subr.mxu0 0.0
      %1032 = vmatpush1.msra.mxu0 0.0
      %1033 = vmatprep.subr.mxu0 0.0
      %1034 = vmatpush1.msra.mxu0 0.0
      %1035 = vmatprep.subr.mxu0 0.0
      %1036 = vmatpush1.msra.mxu0 0.0
      %1037 = vmatprep.subr.mxu0 0.0
      %1038 = vmatpush1.msra.mxu0 0.0
      %1039 = vmatprep.subr.mxu0 0.0
      %1040 = vmatpush1.msra.mxu0 0.0
      %1041 = vmatprep.subr.mxu0 0.0
      %1042 = vmatpush1.msra.mxu0 0.0
      %1043 = vmatprep.subr.mxu0 0.0
      %1044 = vmatpush1.msra.mxu0 0.0
      %1045 = vmatprep.subr.mxu0 0.0
      %1046 = vmatpush1.msra.mxu0 0.0
      %1047 = vmatprep.subr.mxu0 0.0
      %1048 = vmatpush1.msra.mxu0 0.0
      %1049 = vmatprep.subr.mxu0 0.0
      %1050 = vmatpush1.msra.mxu0 0.0
      %1051 = vmatprep.subr.mxu0 0.0
      %1052 = vmatpush1.msra.mxu0 0.0
      %1053 = vmatprep.subr.mxu0 0.0
      %1054 = vmatpush1.msra.mxu0 0.0
      %1055 = vmatprep.subr.mxu0 0.0
      %1056 = vmatpush1.msra.mxu0 0.0
      %1057 = vmatprep.subr.mxu0 0.0
      %1058 = vmatpush1.msra.mxu0 0.0
      %1059 = vmatprep.subr.mxu0 0.0
      %1060 = vmatpush1.msra.mxu0 0.0
      %1061 = vmatprep.mubr.f32.mxu0 0.0
      %1062 = vmatmul.mubr.f32.gmra.mrb[0].mxu0 %v779
      %v1063 = vpop.f32.mrb[0].mxu0
      %v1064 = vadd.f32 0.0, %v1063
      %v1065 = vpop.f32.mrb[0].mxu0
      %v1066 = vadd.f32 0.0, %v1065
      %1067 = vmatprep.mubr.f32.mxu0 0.0
      %1068 = vmatmul.mubr.f32.gmra.mrb[0].mxu0 %v782
      %v1069 = vpop.f32.mrb[0].mxu0
      %v1070 = vadd.f32 0.0, %v1069
      %v1071 = vpop.f32.mrb[0].mxu0
      %v1072 = vadd.f32 0.0, %v1071
      %1073 = vmatprep.mubr.f32.mxu0 0.0
      %1074 = vmatmul.mubr.f32.gmra.mrb[0].mxu0 %v785
      %v1075 = vpop.f32.mrb[0].mxu0
      %v1076 = vadd.f32 0.0, %v1075
      %v1077 = vpop.f32.mrb[0].mxu0
      %v1078 = vadd.f32 0.0, %v1077
      %1079 = vmatprep.mubr.f32.mxu0 0.0
      %1080 = vmatmul.mubr.f32.gmra.mrb[0].mxu0 %v788
      %v1081 = vpop.f32.mrb[0].mxu0
      %v1082 = vadd.f32 0.0, %v1081
      %v1083 = vpop.f32.mrb[0].mxu0
      %v1084 = vadd.f32 0.0, %v1083
      %1085 = vmatprep.mubr.f32.mxu0 0.0
      %1086 = vmatmul.mubr.f32.gmra.mrb[0].mxu0 %v791
      %v1087 = vpop.f32.mrb[0].mxu0
      %v1088 = vadd.f32 0.0, %v1087
      %v1089 = vpop.f32.mrb[0].mxu0
      %v1090 = vadd.f32 0.0, %v1089
      %1091 = vmatprep.mubr.f32.mxu0 0.0
      %1092 = vmatmul.mubr.f32.gmra.mrb[0].mxu0 %v794
      %v1093 = vpop.f32.mrb[0].mxu0
      %v1094 = vadd.f32 0.0, %v1093
      %v1095 = vpop.f32.mrb[0].mxu0
      %v1096 = vadd.f32 0.0, %v1095
      %1097 = vmatprep.mubr.f32.mxu0 0.0
      %1098 = vmatmul.mubr.f32.gmra.mrb[0].mxu0 %v797
      %v1099 = vpop.f32.mrb[0].mxu0
      %v1100 = vadd.f32 0.0, %v1099
      %v1101 = vpop.f32.mrb[0].mxu0
      %v1102 = vadd.f32 0.0, %v1101
      %1103 = vmatprep.mubr.f32.mxu0 0.0
      %1104 = vmatmul.mubr.f32.gmra.mrb[0].mxu0 %v800
      %v1105 = vpop.f32.mrb[0].mxu0
      %v1106 = vadd.f32 0.0, %v1105
      %v1107 = vpop.f32.mrb[0].mxu0
      %v1108 = vadd.f32 0.0, %v1107
      %1109 = vmatprep.mubr.f32.mxu0 0.0
      %1110 = vmatmul.mubr.f32.gmra.mrb[0].mxu0 %v803
      %v1111 = vpop.f32.mrb[0].mxu0
      %v1112 = vadd.f32 0.0, %v1111
      %v1113 = vpop.f32.mrb[0].mxu0
      %v1114 = vadd.f32 0.0, %v1113
      %1115 = vmatprep.mubr.f32.mxu0 0.0
      %1116 = vmatmul.mubr.f32.gmra.mrb[0].mxu0 %v806
      %v1117 = vpop.f32.mrb[0].mxu0
      %v1118 = vadd.f32 0.0, %v1117
      %v1119 = vpop.f32.mrb[0].mxu0
      %v1120 = vadd.f32 0.0, %v1119
      %1121 = vmatprep.mubr.f32.mxu0 0.0
      %1122 = vmatmul.mubr.f32.gmra.mrb[0].mxu0 %v809
      %v1123 = vpop.f32.mrb[0].mxu0
      %v1124 = vadd.f32 0.0, %v1123
      %v1125 = vpop.f32.mrb[0].mxu0
      %v1126 = vadd.f32 0.0, %v1125
      %1127 = vmatprep.mubr.f32.mxu0 0.0
      %1128 = vmatmul.mubr.f32.gmra.mrb[0].mxu0 %v812
      %v1129 = vpop.f32.mrb[0].mxu0
      %v1130 = vadd.f32 0.0, %v1129
      %v1131 = vpop.f32.mrb[0].mxu0
      %v1132 = vadd.f32 0.0, %v1131
      %1133 = vmatprep.mubr.f32.mxu0 0.0
      %1134 = vmatmul.mubr.f32.gmra.mrb[0].mxu0 %v815
      %v1135 = vpop.f32.mrb[0].mxu0
      %v1136 = vadd.f32 0.0, %v1135
      %v1137 = vpop.f32.mrb[0].mxu0
      %v1138 = vadd.f32 0.0, %v1137
      %1139 = vmatprep.mubr.f32.mxu0 0.0
      %1140 = vmatmul.mubr.f32.gmra.mrb[0].mxu0 %v818
      %v1141 = vpop.f32.mrb[0].mxu0
      %v1142 = vadd.f32 0.0, %v1141
      %v1143 = vpop.f32.mrb[0].mxu0
      %v1144 = vadd.f32 0.0, %v1143
      %1145 = vmatprep.mubr.f32.mxu0 0.0
      %1146 = vmatmul.mubr.f32.gmra.mrb[0].mxu0 %v821
      %v1147 = vpop.f32.mrb[0].mxu0
      %v1148 = vadd.f32 0.0, %v1147
      %v1149 = vpop.f32.mrb[0].mxu0
      %v1150 = vadd.f32 0.0, %v1149
      %1151 = vmatprep.mubr.f32.mxu0 0.0
      %1152 = vmatmul.mubr.f32.gmra.mrb[0].mxu0 %v824
      %v1153 = vpop.f32.mrb[0].mxu0
      %v1154 = vadd.f32 0.0, %v1153
      %v1155 = vpop.f32.mrb[0].mxu0
      %v1156 = vadd.f32 0.0, %v1155
      %1157 = vdwg.mxu0
      %v1158 = vmul.f32 %v1064, 2.0
      %v1159 = vmul.f32 %v1066, 2.0
      %v1160 = vmul.f32 %v1070, 2.0
      %v1161 = vmul.f32 %v1072, 2.0
      %v1162 = vmul.f32 %v1076, 2.0
      %v1163 = vmul.f32 %v1078, 2.0
      %v1164 = vmul.f32 %v1082, 2.0
      %v1165 = vmul.f32 %v1084, 2.0
      %v1166 = vmul.f32 %v1088, 2.0
      %v1167 = vmul.f32 %v1090, 2.0
      %v1168 = vmul.f32 %v1094, 2.0
      %v1169 = vmul.f32 %v1096, 2.0
      %v1170 = vmul.f32 %v1100, 2.0
      %v1171 = vmul.f32 %v1102, 2.0
      %v1172 = vmul.f32 %v1106, 2.0
      %v1173 = vmul.f32 %v1108, 2.0
      %v1174 = vmul.f32 %v1112, 2.0
      %v1175 = vmul.f32 %v1114, 2.0
      %v1176 = vmul.f32 %v1118, 2.0
      %v1177 = vmul.f32 %v1120, 2.0
      %v1178 = vmul.f32 %v1124, 2.0
      %v1179 = vmul.f32 %v1126, 2.0
      %v1180 = vmul.f32 %v1130, 2.0
      %v1181 = vmul.f32 %v1132, 2.0
      %v1182 = vmul.f32 %v1136, 2.0
      %v1183 = vmul.f32 %v1138, 2.0
      %v1184 = vmul.f32 %v1142, 2.0
      %v1185 = vmul.f32 %v1144, 2.0
      %v1186 = vmul.f32 %v1148, 2.0
      %v1187 = vmul.f32 %v1150, 2.0
      %v1188 = vmul.f32 %v1154, 2.0
      %v1189 = vmul.f32 %v1156, 2.0
      %v1190 = vsub.f32 %v611, %v1158
      %v1191 = vsub.f32 %v611, %v1159
      %v1192 = vsub.f32 %v614, %v1160
      %v1193 = vsub.f32 %v614, %v1161
      %v1194 = vsub.f32 %v617, %v1162
      %v1195 = vsub.f32 %v617, %v1163
      %v1196 = vsub.f32 %v620, %v1164
      %v1197 = vsub.f32 %v620, %v1165
      %v1198 = vsub.f32 %v623, %v1166
      %v1199 = vsub.f32 %v623, %v1167
      %v1200 = vsub.f32 %v626, %v1168
      %v1201 = vsub.f32 %v626, %v1169
      %v1202 = vsub.f32 %v629, %v1170
      %v1203 = vsub.f32 %v629, %v1171
      %v1204 = vsub.f32 %v632, %v1172
      %v1205 = vsub.f32 %v632, %v1173
      %v1206 = vsub.f32 %v635, %v1174
      %v1207 = vsub.f32 %v635, %v1175
      %v1208 = vsub.f32 %v638, %v1176
      %v1209 = vsub.f32 %v638, %v1177
      %v1210 = vsub.f32 %v641, %v1178
      %v1211 = vsub.f32 %v641, %v1179
      %v1212 = vsub.f32 %v644, %v1180
      %v1213 = vsub.f32 %v644, %v1181
      %v1214 = vsub.f32 %v647, %v1182
      %v1215 = vsub.f32 %v647, %v1183
      %v1216 = vsub.f32 %v650, %v1184
      %v1217 = vsub.f32 %v650, %v1185
      %v1218 = vsub.f32 %v653, %v1186
      %v1219 = vsub.f32 %v653, %v1187
      %v1220 = vsub.f32 %v656, %v1188
      %v1221 = vsub.f32 %v656, %v1189
      %v1222 = vadd.f32 %v1190, %v987
      %v1223 = vadd.f32 %v1191, %v996
      %v1224 = vadd.f32 %v1192, %v987
      %v1225 = vadd.f32 %v1193, %v996
      %v1226 = vadd.f32 %v1194, %v987
      %v1227 = vadd.f32 %v1195, %v996
      %v1228 = vadd.f32 %v1196, %v987
      %v1229 = vadd.f32 %v1197, %v996
      %v1230 = vadd.f32 %v1198, %v987
      %v1231 = vadd.f32 %v1199, %v996
      %v1232 = vadd.f32 %v1200, %v987
      %v1233 = vadd.f32 %v1201, %v996
      %v1234 = vadd.f32 %v1202, %v987
      %v1235 = vadd.f32 %v1203, %v996
      %v1236 = vadd.f32 %v1204, %v987
      %v1237 = vadd.f32 %v1205, %v996
      %v1238 = vadd.f32 %v1206, %v987
      %v1239 = vadd.f32 %v1207, %v996
      %v1240 = vadd.f32 %v1208, %v987
      %v1241 = vadd.f32 %v1209, %v996
      %v1242 = vadd.f32 %v1210, %v987
      %v1243 = vadd.f32 %v1211, %v996
      %v1244 = vadd.f32 %v1212, %v987
      %v1245 = vadd.f32 %v1213, %v996
      %v1246 = vadd.f32 %v1214, %v987
      %v1247 = vadd.f32 %v1215, %v996
      %v1248 = vadd.f32 %v1216, %v987
      %v1249 = vadd.f32 %v1217, %v996
      %v1250 = vadd.f32 %v1218, %v987
      %v1251 = vadd.f32 %v1219, %v996
      %v1252 = vadd.f32 %v1220, %v987
      %v1253 = vadd.f32 %v1221, %v996
      %v1254 = vmax.f32 %v1222, 0.0
      %v1255 = vmax.f32 %v1223, 0.0
      %v1256 = vmax.f32 %v1224, 0.0
      %v1257 = vmax.f32 %v1225, 0.0
      %v1258 = vmax.f32 %v1226, 0.0
      %v1259 = vmax.f32 %v1227, 0.0
      %v1260 = vmax.f32 %v1228, 0.0
      %v1261 = vmax.f32 %v1229, 0.0
      %v1262 = vmax.f32 %v1230, 0.0
      %v1263 = vmax.f32 %v1231, 0.0
      %v1264 = vmax.f32 %v1232, 0.0
      %v1265 = vmax.f32 %v1233, 0.0
      %v1266 = vmax.f32 %v1234, 0.0
      %v1267 = vmax.f32 %v1235, 0.0
      %v1268 = vmax.f32 %v1236, 0.0
      %v1269 = vmax.f32 %v1237, 0.0
      %v1270 = vmax.f32 %v1238, 0.0
      %v1271 = vmax.f32 %v1239, 0.0
      %v1272 = vmax.f32 %v1240, 0.0
      %v1273 = vmax.f32 %v1241, 0.0
      %v1274 = vmax.f32 %v1242, 0.0
      %v1275 = vmax.f32 %v1243, 0.0
      %v1276 = vmax.f32 %v1244, 0.0
      %v1277 = vmax.f32 %v1245, 0.0
      %v1278 = vmax.f32 %v1246, 0.0
      %v1279 = vmax.f32 %v1247, 0.0
      %v1280 = vmax.f32 %v1248, 0.0
      %v1281 = vmax.f32 %v1249, 0.0
      %v1282 = vmax.f32 %v1250, 0.0
      %v1283 = vmax.f32 %v1251, 0.0
      %v1284 = vmax.f32 %v1252, 0.0
      %v1285 = vmax.f32 %v1253, 0.0
      %v1286 = vrsqrt.pop %v1254
      %v1287 = vmul.f32 %v1254, %v1286
      %vm1288 = vcmp.eq.f32.partialorder %v1254, inf
      %v1289 = vsel %vm1288, %v1254, %v1287
      %vm1290 = vcmp.eq.f32.partialorder %v1254, 0.0
      %v1291 = vand.u32 %v1254, 2147483648
      %v1292 = vsel %vm1290, %v1291, %v1289
      %v1293 = vrsqrt.pop %v1255
      %v1294 = vmul.f32 %v1255, %v1293
      %vm1295 = vcmp.eq.f32.partialorder %v1255, inf
      %v1296 = vsel %vm1295, %v1255, %v1294
      %vm1297 = vcmp.eq.f32.partialorder %v1255, 0.0
      %v1298 = vand.u32 %v1255, 2147483648
      %v1299 = vsel %vm1297, %v1298, %v1296
      %v1300 = vrsqrt.pop %v1256
      %v1301 = vmul.f32 %v1256, %v1300
      %vm1302 = vcmp.eq.f32.partialorder %v1256, inf
      %v1303 = vsel %vm1302, %v1256, %v1301
      %vm1304 = vcmp.eq.f32.partialorder %v1256, 0.0
      %v1305 = vand.u32 %v1256, 2147483648
      %v1306 = vsel %vm1304, %v1305, %v1303
      %v1307 = vrsqrt.pop %v1257
      %v1308 = vmul.f32 %v1257, %v1307
      %vm1309 = vcmp.eq.f32.partialorder %v1257, inf
      %v1310 = vsel %vm1309, %v1257, %v1308
      %vm1311 = vcmp.eq.f32.partialorder %v1257, 0.0
      %v1312 = vand.u32 %v1257, 2147483648
      %v1313 = vsel %vm1311, %v1312, %v1310
      %v1314 = vrsqrt.pop %v1258
      %v1315 = vmul.f32 %v1258, %v1314
      %vm1316 = vcmp.eq.f32.partialorder %v1258, inf
      %v1317 = vsel %vm1316, %v1258, %v1315
      %vm1318 = vcmp.eq.f32.partialorder %v1258, 0.0
      %v1319 = vand.u32 %v1258, 2147483648
      %v1320 = vsel %vm1318, %v1319, %v1317
      %v1321 = vrsqrt.pop %v1259
      %v1322 = vmul.f32 %v1259, %v1321
      %vm1323 = vcmp.eq.f32.partialorder %v1259, inf
      %v1324 = vsel %vm1323, %v1259, %v1322
      %vm1325 = vcmp.eq.f32.partialorder %v1259, 0.0
      %v1326 = vand.u32 %v1259, 2147483648
      %v1327 = vsel %vm1325, %v1326, %v1324
      %v1328 = vrsqrt.pop %v1260
      %v1329 = vmul.f32 %v1260, %v1328
      %vm1330 = vcmp.eq.f32.partialorder %v1260, inf
      %v1331 = vsel %vm1330, %v1260, %v1329
      %vm1332 = vcmp.eq.f32.partialorder %v1260, 0.0
      %v1333 = vand.u32 %v1260, 2147483648
      %v1334 = vsel %vm1332, %v1333, %v1331
      %v1335 = vrsqrt.pop %v1261
      %v1336 = vmul.f32 %v1261, %v1335
      %vm1337 = vcmp.eq.f32.partialorder %v1261, inf
      %v1338 = vsel %vm1337, %v1261, %v1336
      %vm1339 = vcmp.eq.f32.partialorder %v1261, 0.0
      %v1340 = vand.u32 %v1261, 2147483648
      %v1341 = vsel %vm1339, %v1340, %v1338
      %v1342 = vrsqrt.pop %v1262
      %v1343 = vmul.f32 %v1262, %v1342
      %vm1344 = vcmp.eq.f32.partialorder %v1262, inf
      %v1345 = vsel %vm1344, %v1262, %v1343
      %vm1346 = vcmp.eq.f32.partialorder %v1262, 0.0
      %v1347 = vand.u32 %v1262, 2147483648
      %v1348 = vsel %vm1346, %v1347, %v1345
      %v1349 = vrsqrt.pop %v1263
      %v1350 = vmul.f32 %v1263, %v1349
      %vm1351 = vcmp.eq.f32.partialorder %v1263, inf
      %v1352 = vsel %vm1351, %v1263, %v1350
      %vm1353 = vcmp.eq.f32.partialorder %v1263, 0.0
      %v1354 = vand.u32 %v1263, 2147483648
      %v1355 = vsel %vm1353, %v1354, %v1352
      %v1356 = vrsqrt.pop %v1264
      %v1357 = vmul.f32 %v1264, %v1356
      %vm1358 = vcmp.eq.f32.partialorder %v1264, inf
      %v1359 = vsel %vm1358, %v1264, %v1357
      %vm1360 = vcmp.eq.f32.partialorder %v1264, 0.0
      %v1361 = vand.u32 %v1264, 2147483648
      %v1362 = vsel %vm1360, %v1361, %v1359
      %v1363 = vrsqrt.pop %v1265
      %v1364 = vmul.f32 %v1265, %v1363
      %vm1365 = vcmp.eq.f32.partialorder %v1265, inf
      %v1366 = vsel %vm1365, %v1265, %v1364
      %vm1367 = vcmp.eq.f32.partialorder %v1265, 0.0
      %v1368 = vand.u32 %v1265, 2147483648
      %v1369 = vsel %vm1367, %v1368, %v1366
      %v1370 = vrsqrt.pop %v1266
      %v1371 = vmul.f32 %v1266, %v1370
      %vm1372 = vcmp.eq.f32.partialorder %v1266, inf
      %v1373 = vsel %vm1372, %v1266, %v1371
      %vm1374 = vcmp.eq.f32.partialorder %v1266, 0.0
      %v1375 = vand.u32 %v1266, 2147483648
      %v1376 = vsel %vm1374, %v1375, %v1373
      %v1377 = vrsqrt.pop %v1267
      %v1378 = vmul.f32 %v1267, %v1377
      %vm1379 = vcmp.eq.f32.partialorder %v1267, inf
      %v1380 = vsel %vm1379, %v1267, %v1378
      %vm1381 = vcmp.eq.f32.partialorder %v1267, 0.0
      %v1382 = vand.u32 %v1267, 2147483648
      %v1383 = vsel %vm1381, %v1382, %v1380
      %v1384 = vrsqrt.pop %v1268
      %v1385 = vmul.f32 %v1268, %v1384
      %vm1386 = vcmp.eq.f32.partialorder %v1268, inf
      %v1387 = vsel %vm1386, %v1268, %v1385
      %vm1388 = vcmp.eq.f32.partialorder %v1268, 0.0
      %v1389 = vand.u32 %v1268, 2147483648
      %v1390 = vsel %vm1388, %v1389, %v1387
      %v1391 = vrsqrt.pop %v1269
      %v1392 = vmul.f32 %v1269, %v1391
      %vm1393 = vcmp.eq.f32.partialorder %v1269, inf
      %v1394 = vsel %vm1393, %v1269, %v1392
      %vm1395 = vcmp.eq.f32.partialorder %v1269, 0.0
      %v1396 = vand.u32 %v1269, 2147483648
      %v1397 = vsel %vm1395, %v1396, %v1394
      %v1398 = vrsqrt.pop %v1270
      %v1399 = vmul.f32 %v1270, %v1398
      %vm1400 = vcmp.eq.f32.partialorder %v1270, inf
      %v1401 = vsel %vm1400, %v1270, %v1399
      %vm1402 = vcmp.eq.f32.partialorder %v1270, 0.0
      %v1403 = vand.u32 %v1270, 2147483648
      %v1404 = vsel %vm1402, %v1403, %v1401
      %v1405 = vrsqrt.pop %v1271
      %v1406 = vmul.f32 %v1271, %v1405
      %vm1407 = vcmp.eq.f32.partialorder %v1271, inf
      %v1408 = vsel %vm1407, %v1271, %v1406
      %vm1409 = vcmp.eq.f32.partialorder %v1271, 0.0
      %v1410 = vand.u32 %v1271, 2147483648
      %v1411 = vsel %vm1409, %v1410, %v1408
      %v1412 = vrsqrt.pop %v1272
      %v1413 = vmul.f32 %v1272, %v1412
      %vm1414 = vcmp.eq.f32.partialorder %v1272, inf
      %v1415 = vsel %vm1414, %v1272, %v1413
      %vm1416 = vcmp.eq.f32.partialorder %v1272, 0.0
      %v1417 = vand.u32 %v1272, 2147483648
      %v1418 = vsel %vm1416, %v1417, %v1415
      %v1419 = vrsqrt.pop %v1273
      %v1420 = vmul.f32 %v1273, %v1419
      %vm1421 = vcmp.eq.f32.partialorder %v1273, inf
      %v1422 = vsel %vm1421, %v1273, %v1420
      %vm1423 = vcmp.eq.f32.partialorder %v1273, 0.0
      %v1424 = vand.u32 %v1273, 2147483648
      %v1425 = vsel %vm1423, %v1424, %v1422
      %v1426 = vrsqrt.pop %v1274
      %v1427 = vmul.f32 %v1274, %v1426
      %vm1428 = vcmp.eq.f32.partialorder %v1274, inf
      %v1429 = vsel %vm1428, %v1274, %v1427
      %vm1430 = vcmp.eq.f32.partialorder %v1274, 0.0
      %v1431 = vand.u32 %v1274, 2147483648
      %v1432 = vsel %vm1430, %v1431, %v1429
      %v1433 = vrsqrt.pop %v1275
      %v1434 = vmul.f32 %v1275, %v1433
      %vm1435 = vcmp.eq.f32.partialorder %v1275, inf
      %v1436 = vsel %vm1435, %v1275, %v1434
      %vm1437 = vcmp.eq.f32.partialorder %v1275, 0.0
      %v1438 = vand.u32 %v1275, 2147483648
      %v1439 = vsel %vm1437, %v1438, %v1436
      %v1440 = vrsqrt.pop %v1276
      %v1441 = vmul.f32 %v1276, %v1440
      %vm1442 = vcmp.eq.f32.partialorder %v1276, inf
      %v1443 = vsel %vm1442, %v1276, %v1441
      %vm1444 = vcmp.eq.f32.partialorder %v1276, 0.0
      %v1445 = vand.u32 %v1276, 2147483648
      %v1446 = vsel %vm1444, %v1445, %v1443
      %v1447 = vrsqrt.pop %v1277
      %v1448 = vmul.f32 %v1277, %v1447
      %vm1449 = vcmp.eq.f32.partialorder %v1277, inf
      %v1450 = vsel %vm1449, %v1277, %v1448
      %vm1451 = vcmp.eq.f32.partialorder %v1277, 0.0
      %v1452 = vand.u32 %v1277, 2147483648
      %v1453 = vsel %vm1451, %v1452, %v1450
      %v1454 = vrsqrt.pop %v1278
      %v1455 = vmul.f32 %v1278, %v1454
      %vm1456 = vcmp.eq.f32.partialorder %v1278, inf
      %v1457 = vsel %vm1456, %v1278, %v1455
      %vm1458 = vcmp.eq.f32.partialorder %v1278, 0.0
      %v1459 = vand.u32 %v1278, 2147483648
      %v1460 = vsel %vm1458, %v1459, %v1457
      %v1461 = vrsqrt.pop %v1279
      %v1462 = vmul.f32 %v1279, %v1461
      %vm1463 = vcmp.eq.f32.partialorder %v1279, inf
      %v1464 = vsel %vm1463, %v1279, %v1462
      %vm1465 = vcmp.eq.f32.partialorder %v1279, 0.0
      %v1466 = vand.u32 %v1279, 2147483648
      %v1467 = vsel %vm1465, %v1466, %v1464
      %v1468 = vrsqrt.pop %v1280
      %v1469 = vmul.f32 %v1280, %v1468
      %vm1470 = vcmp.eq.f32.partialorder %v1280, inf
      %v1471 = vsel %vm1470, %v1280, %v1469
      %vm1472 = vcmp.eq.f32.partialorder %v1280, 0.0
      %v1473 = vand.u32 %v1280, 2147483648
      %v1474 = vsel %vm1472, %v1473, %v1471
      %v1475 = vrsqrt.pop %v1281
      %v1476 = vmul.f32 %v1281, %v1475
      %vm1477 = vcmp.eq.f32.partialorder %v1281, inf
      %v1478 = vsel %vm1477, %v1281, %v1476
      %vm1479 = vcmp.eq.f32.partialorder %v1281, 0.0
      %v1480 = vand.u32 %v1281, 2147483648
      %v1481 = vsel %vm1479, %v1480, %v1478
      %v1482 = vrsqrt.pop %v1282
      %v1483 = vmul.f32 %v1282, %v1482
      %vm1484 = vcmp.eq.f32.partialorder %v1282, inf
      %v1485 = vsel %vm1484, %v1282, %v1483
      %vm1486 = vcmp.eq.f32.partialorder %v1282, 0.0
      %v1487 = vand.u32 %v1282, 2147483648
      %v1488 = vsel %vm1486, %v1487, %v1485
      %v1489 = vrsqrt.pop %v1283
      %v1490 = vmul.f32 %v1283, %v1489
      %vm1491 = vcmp.eq.f32.partialorder %v1283, inf
      %v1492 = vsel %vm1491, %v1283, %v1490
      %vm1493 = vcmp.eq.f32.partialorder %v1283, 0.0
      %v1494 = vand.u32 %v1283, 2147483648
      %v1495 = vsel %vm1493, %v1494, %v1492
      %v1496 = vrsqrt.pop %v1284
      %v1497 = vmul.f32 %v1284, %v1496
      %vm1498 = vcmp.eq.f32.partialorder %v1284, inf
      %v1499 = vsel %vm1498, %v1284, %v1497
      %vm1500 = vcmp.eq.f32.partialorder %v1284, 0.0
      %v1501 = vand.u32 %v1284, 2147483648
      %v1502 = vsel %vm1500, %v1501, %v1499
      %v1503 = vrsqrt.pop %v1285
      %v1504 = vmul.f32 %v1285, %v1503
      %vm1505 = vcmp.eq.f32.partialorder %v1285, inf
      %v1506 = vsel %vm1505, %v1285, %v1504
      %vm1507 = vcmp.eq.f32.partialorder %v1285, 0.0
      %v1508 = vand.u32 %v1285, 2147483648
      %v1509 = vsel %vm1507, %v1508, %v1506
      %v1510 = vmul.f32 %v1292, %v303
      %v1511 = vmul.f32 %v1299, %v304
      %v1512 = vmul.f32 %v1306, %v305
      %v1513 = vmul.f32 %v1313, %v306
      %v1514 = vmul.f32 %v1320, %v307
      %v1515 = vmul.f32 %v1327, %v308
      %v1516 = vmul.f32 %v1334, %v309
      %v1517 = vmul.f32 %v1341, %v310
      %v1518 = vmul.f32 %v1348, %v311
      %v1519 = vmul.f32 %v1355, %v312
      %v1520 = vmul.f32 %v1362, %v313
      %v1521 = vmul.f32 %v1369, %v314
      %v1522 = vmul.f32 %v1376, %v315
      %v1523 = vmul.f32 %v1383, %v316
      %v1524 = vmul.f32 %v1390, %v317
      %v1525 = vmul.f32 %v1397, %v318
      %v1526 = vmul.f32 %v1404, %v319
      %v1527 = vmul.f32 %v1411, %v320
      %v1528 = vmul.f32 %v1418, %v321
      %v1529 = vmul.f32 %v1425, %v322
      %v1530 = vmul.f32 %v1432, %v323
      %v1531 = vmul.f32 %v1439, %v324
      %v1532 = vmul.f32 %v1446, %v325
      %v1533 = vmul.f32 %v1453, %v326
      %v1534 = vmul.f32 %v1460, %v327
      %v1535 = vmul.f32 %v1467, %v328
      %v1536 = vmul.f32 %v1474, %v329
      %v1537 = vmul.f32 %v1481, %v330
      %v1538 = vmul.f32 %v1488, %v331
      %v1539 = vmul.f32 %v1495, %v332
      %v1540 = vmul.f32 %v1502, %v333
      %v1541 = vmul.f32 %v1509, %v334
      %v1542 = vadd.f32 %v1510, %v1511
      %1543 = vadd.xlane.f32.xlu0 %v1542
      %v1544 = vpop.xlane.xlu0 %1543
      %v1545 = vadd.f32 %v1512, %v1513
      %1546 = vadd.xlane.f32.xlu0 %v1545
      %v1547 = vpop.xlane.xlu0 %1546
      %v1548 = vadd.f32 %v1514, %v1515
      %1549 = vadd.xlane.f32.xlu0 %v1548
      %v1550 = vpop.xlane.xlu0 %1549
      %v1551 = vadd.f32 %v1516, %v1517
      %1552 = vadd.xlane.f32.xlu0 %v1551
      %v1553 = vpop.xlane.xlu0 %1552
      %v1554 = vadd.f32 %v1518, %v1519
      %1555 = vadd.xlane.f32.xlu0 %v1554
      %v1556 = vpop.xlane.xlu0 %1555
      %v1557 = vadd.f32 %v1520, %v1521
      %1558 = vadd.xlane.f32.xlu0 %v1557
      %v1559 = vpop.xlane.xlu0 %1558
      %v1560 = vadd.f32 %v1522, %v1523
      %1561 = vadd.xlane.f32.xlu0 %v1560
      %v1562 = vpop.xlane.xlu0 %1561
      %v1563 = vadd.f32 %v1524, %v1525
      %1564 = vadd.xlane.f32.xlu0 %v1563
      %v1565 = vpop.xlane.xlu0 %1564
      %v1566 = vadd.f32 %v1526, %v1527
      %1567 = vadd.xlane.f32.xlu0 %v1566
      %v1568 = vpop.xlane.xlu0 %1567
      %v1569 = vadd.f32 %v1528, %v1529
      %1570 = vadd.xlane.f32.xlu0 %v1569
      %v1571 = vpop.xlane.xlu0 %1570
      %v1572 = vadd.f32 %v1530, %v1531
      %1573 = vadd.xlane.f32.xlu0 %v1572
      %v1574 = vpop.xlane.xlu0 %1573
      %v1575 = vadd.f32 %v1532, %v1533
      %1576 = vadd.xlane.f32.xlu0 %v1575
      %v1577 = vpop.xlane.xlu0 %1576
      %v1578 = vadd.f32 %v1534, %v1535
      %1579 = vadd.xlane.f32.xlu0 %v1578
      %v1580 = vpop.xlane.xlu0 %1579
      %v1581 = vadd.f32 %v1536, %v1537
      %1582 = vadd.xlane.f32.xlu0 %v1581
      %v1583 = vpop.xlane.xlu0 %1582
      %v1584 = vadd.f32 %v1538, %v1539
      %1585 = vadd.xlane.f32.xlu0 %v1584
      %v1586 = vpop.xlane.xlu0 %1585
      %v1587 = vadd.f32 %v1540, %v1541
      %1588 = vadd.xlane.f32.xlu0 %v1587
      %v1589 = vpop.xlane.xlu0 %1588
      %v1590 = vmul.f32 %v1544, %v400
      %v1591 = vmul.f32 %v1547, %v402
      %v1592 = vmul.f32 %v1550, %v404
      %v1593 = vmul.f32 %v1553, %v406
      %v1594 = vmul.f32 %v1556, %v408
      %v1595 = vmul.f32 %v1559, %v410
      %v1596 = vmul.f32 %v1562, %v412
      %v1597 = vmul.f32 %v1565, %v414
      %v1598 = vmul.f32 %v1568, %v416
      %v1599 = vmul.f32 %v1571, %v418
      %v1600 = vmul.f32 %v1574, %v420
      %v1601 = vmul.f32 %v1577, %v422
      %v1602 = vmul.f32 %v1580, %v424
      %v1603 = vmul.f32 %v1583, %v426
      %v1604 = vmul.f32 %v1586, %v428
      %v1605 = vmul.f32 %v1589, %v430
      %v1606 = vadd.f32 %v1590, %v1591
      %v1607 = vadd.f32 %v1606, %v1592
      %v1608 = vadd.f32 %v1607, %v1593
      %v1609 = vadd.f32 %v1608, %v1594
      %v1610 = vadd.f32 %v1609, %v1595
      %v1611 = vadd.f32 %v1610, %v1596
      %v1612 = vadd.f32 %v1611, %v1597
      %v1613 = vadd.f32 %v1612, %v1598
      %v1614 = vadd.f32 %v1613, %v1599
      %v1615 = vadd.f32 %v1614, %v1600
      %v1616 = vadd.f32 %v1615, %v1601
      %v1617 = vadd.f32 %v1616, %v1602
      %v1618 = vadd.f32 %v1617, %v1603
      %v1619 = vadd.f32 %v1618, %v1604
      %v1620 = vadd.f32 %v1619, %v1605
      %v1621 = vrot.slane %v1620, 4
      %v1622 = vadd.f32 %v1620, %v1621
      %v1623 = vrot.slane %v1622, 2
      %v1624 = vadd.f32 %v1622, %v1623
      %v1625 = vrot.slane %v1624, 1
      %v1626 = vadd.f32 %v1624, %v1625
      %vm1627 = vcmp.gt.f32.partialorder %v337, 0.0
      %vm1628 = vcmp.gt.f32.partialorder %v340, 0.0
      %vm1629 = vcmp.gt.f32.partialorder %v343, 0.0
      %vm1630 = vcmp.gt.f32.partialorder %v346, 0.0
      %vm1631 = vcmp.gt.f32.partialorder %v349, 0.0
      %vm1632 = vcmp.gt.f32.partialorder %v352, 0.0
      %vm1633 = vcmp.gt.f32.partialorder %v355, 0.0
      %vm1634 = vcmp.gt.f32.partialorder %v358, 0.0
      %vm1635 = vcmp.gt.f32.partialorder %v361, 0.0
      %vm1636 = vcmp.gt.f32.partialorder %v364, 0.0
      %vm1637 = vcmp.gt.f32.partialorder %v367, 0.0
      %vm1638 = vcmp.gt.f32.partialorder %v370, 0.0
      %vm1639 = vcmp.gt.f32.partialorder %v373, 0.0
      %vm1640 = vcmp.gt.f32.partialorder %v376, 0.0
      %vm1641 = vcmp.gt.f32.partialorder %v379, 0.0
      %vm1642 = vcmp.gt.f32.partialorder %v382, 0.0
      %v1643 = vsel %vm1627, 1, 0
      %v1644 = vsel %vm1628, 1, 0
      %v1645 = vsel %vm1629, 1, 0
      %v1646 = vsel %vm1630, 1, 0
      %v1647 = vsel %vm1631, 1, 0
      %v1648 = vsel %vm1632, 1, 0
      %v1649 = vsel %vm1633, 1, 0
      %v1650 = vsel %vm1634, 1, 0
      %v1651 = vsel %vm1635, 1, 0
      %v1652 = vsel %vm1636, 1, 0
      %v1653 = vsel %vm1637, 1, 0
      %v1654 = vsel %vm1638, 1, 0
      %v1655 = vsel %vm1639, 1, 0
      %v1656 = vsel %vm1640, 1, 0
      %v1657 = vsel %vm1641, 1, 0
      %v1658 = vsel %vm1642, 1, 0
      %v1659 = vcvt.s32.f32 %v1643
      %v1660 = vcvt.s32.f32 %v1644
      %v1661 = vcvt.s32.f32 %v1645
      %v1662 = vcvt.s32.f32 %v1646
      %v1663 = vcvt.s32.f32 %v1647
      %v1664 = vcvt.s32.f32 %v1648
      %v1665 = vcvt.s32.f32 %v1649
      %v1666 = vcvt.s32.f32 %v1650
      %v1667 = vcvt.s32.f32 %v1651
      %v1668 = vcvt.s32.f32 %v1652
      %v1669 = vcvt.s32.f32 %v1653
      %v1670 = vcvt.s32.f32 %v1654
      %v1671 = vcvt.s32.f32 %v1655
      %v1672 = vcvt.s32.f32 %v1656
      %v1673 = vcvt.s32.f32 %v1657
      %v1674 = vcvt.s32.f32 %v1658
      %v1675 = vadd.f32 %v1659, %v1660
      %v1676 = vadd.f32 %v1675, %v1661
      %v1677 = vadd.f32 %v1676, %v1662
      %v1678 = vadd.f32 %v1677, %v1663
      %v1679 = vadd.f32 %v1678, %v1664
      %v1680 = vadd.f32 %v1679, %v1665
      %v1681 = vadd.f32 %v1680, %v1666
      %v1682 = vadd.f32 %v1681, %v1667
      %v1683 = vadd.f32 %v1682, %v1668
      %v1684 = vadd.f32 %v1683, %v1669
      %v1685 = vadd.f32 %v1684, %v1670
      %v1686 = vadd.f32 %v1685, %v1671
      %v1687 = vadd.f32 %v1686, %v1672
      %v1688 = vadd.f32 %v1687, %v1673
      %v1689 = vadd.f32 %v1688, %v1674
      %v1690 = vrot.slane %v1689, 4
      %v1691 = vadd.f32 %v1689, %v1690
      %v1692 = vrot.slane %v1691, 2
      %v1693 = vadd.f32 %v1691, %v1692
      %v1694 = vrot.slane %v1693, 1
      %v1695 = vadd.f32 %v1693, %v1694
      %v1696 = vlaneseq
      %v1697 = vshrl.u32 %v1696, 7
      %v1698 = vsub.s32 0, %v1697
      %v1699 = vrot.slane %v775, %v1698
      %v1700 = vadd.f32 %v611, %v1699
      %v1701 = vadd.f32 %v614, %v1699
      %v1702 = vadd.f32 %v617, %v1699
      %v1703 = vadd.f32 %v620, %v1699
      %v1704 = vadd.f32 %v623, %v1699
      %v1705 = vadd.f32 %v626, %v1699
      %v1706 = vadd.f32 %v629, %v1699
      %v1707 = vadd.f32 %v632, %v1699
      %v1708 = vadd.f32 %v635, %v1699
      %v1709 = vadd.f32 %v638, %v1699
      %v1710 = vadd.f32 %v641, %v1699
      %v1711 = vadd.f32 %v644, %v1699
      %v1712 = vadd.f32 %v647, %v1699
      %v1713 = vadd.f32 %v650, %v1699
      %v1714 = vadd.f32 %v653, %v1699
      %v1715 = vadd.f32 %v656, %v1699
      %v1716 = vmul.f32 %v893, 2.0
      %v1717 = vmul.f32 %v898, 2.0
      %v1718 = vmul.f32 %v903, 2.0
      %v1719 = vmul.f32 %v908, 2.0
      %v1720 = vmul.f32 %v913, 2.0
      %v1721 = vmul.f32 %v918, 2.0
      %v1722 = vmul.f32 %v923, 2.0
      %v1723 = vmul.f32 %v928, 2.0
      %v1724 = vmul.f32 %v933, 2.0
      %v1725 = vmul.f32 %v938, 2.0
      %v1726 = vmul.f32 %v943, 2.0
      %v1727 = vmul.f32 %v948, 2.0
      %v1728 = vmul.f32 %v953, 2.0
      %v1729 = vmul.f32 %v958, 2.0
      %v1730 = vmul.f32 %v963, 2.0
      %v1731 = vmul.f32 %v968, 2.0
      %v1732 = vsub.f32 %v1700, %v1716
      %v1733 = vsub.f32 %v1701, %v1717
      %v1734 = vsub.f32 %v1702, %v1718
      %v1735 = vsub.f32 %v1703, %v1719
      %v1736 = vsub.f32 %v1704, %v1720
      %v1737 = vsub.f32 %v1705, %v1721
      %v1738 = vsub.f32 %v1706, %v1722
      %v1739 = vsub.f32 %v1707, %v1723
      %v1740 = vsub.f32 %v1708, %v1724
      %v1741 = vsub.f32 %v1709, %v1725
      %v1742 = vsub.f32 %v1710, %v1726
      %v1743 = vsub.f32 %v1711, %v1727
      %v1744 = vsub.f32 %v1712, %v1728
      %v1745 = vsub.f32 %v1713, %v1729
      %v1746 = vsub.f32 %v1714, %v1730
      %v1747 = vsub.f32 %v1715, %v1731
      %v1748 = vmax.f32 %v1732, 0.0
      %v1749 = vmax.f32 %v1733, 0.0
      %v1750 = vmax.f32 %v1734, 0.0
      %v1751 = vmax.f32 %v1735, 0.0
      %v1752 = vmax.f32 %v1736, 0.0
      %v1753 = vmax.f32 %v1737, 0.0
      %v1754 = vmax.f32 %v1738, 0.0
      %v1755 = vmax.f32 %v1739, 0.0
      %v1756 = vmax.f32 %v1740, 0.0
      %v1757 = vmax.f32 %v1741, 0.0
      %v1758 = vmax.f32 %v1742, 0.0
      %v1759 = vmax.f32 %v1743, 0.0
      %v1760 = vmax.f32 %v1744, 0.0
      %v1761 = vmax.f32 %v1745, 0.0
      %v1762 = vmax.f32 %v1746, 0.0
      %v1763 = vmax.f32 %v1747, 0.0
      %v1764 = vrsqrt.pop %v1748
      %v1765 = vmul.f32 %v1748, %v1764
      %vm1766 = vcmp.eq.f32.partialorder %v1748, inf
      %v1767 = vsel %vm1766, %v1748, %v1765
      %vm1768 = vcmp.eq.f32.partialorder %v1748, 0.0
      %v1769 = vand.u32 %v1748, 2147483648
      %v1770 = vsel %vm1768, %v1769, %v1767
      %v1771 = vrsqrt.pop %v1749
      %v1772 = vmul.f32 %v1749, %v1771
      %vm1773 = vcmp.eq.f32.partialorder %v1749, inf
      %v1774 = vsel %vm1773, %v1749, %v1772
      %vm1775 = vcmp.eq.f32.partialorder %v1749, 0.0
      %v1776 = vand.u32 %v1749, 2147483648
      %v1777 = vsel %vm1775, %v1776, %v1774
      %v1778 = vrsqrt.pop %v1750
      %v1779 = vmul.f32 %v1750, %v1778
      %vm1780 = vcmp.eq.f32.partialorder %v1750, inf
      %v1781 = vsel %vm1780, %v1750, %v1779
      %vm1782 = vcmp.eq.f32.partialorder %v1750, 0.0
      %v1783 = vand.u32 %v1750, 2147483648
      %v1784 = vsel %vm1782, %v1783, %v1781
      %v1785 = vrsqrt.pop %v1751
      %v1786 = vmul.f32 %v1751, %v1785
      %vm1787 = vcmp.eq.f32.partialorder %v1751, inf
      %v1788 = vsel %vm1787, %v1751, %v1786
      %vm1789 = vcmp.eq.f32.partialorder %v1751, 0.0
      %v1790 = vand.u32 %v1751, 2147483648
      %v1791 = vsel %vm1789, %v1790, %v1788
      %v1792 = vrsqrt.pop %v1752
      %v1793 = vmul.f32 %v1752, %v1792
      %vm1794 = vcmp.eq.f32.partialorder %v1752, inf
      %v1795 = vsel %vm1794, %v1752, %v1793
      %vm1796 = vcmp.eq.f32.partialorder %v1752, 0.0
      %v1797 = vand.u32 %v1752, 2147483648
      %v1798 = vsel %vm1796, %v1797, %v1795
      %v1799 = vrsqrt.pop %v1753
      %v1800 = vmul.f32 %v1753, %v1799
      %vm1801 = vcmp.eq.f32.partialorder %v1753, inf
      %v1802 = vsel %vm1801, %v1753, %v1800
      %vm1803 = vcmp.eq.f32.partialorder %v1753, 0.0
      %v1804 = vand.u32 %v1753, 2147483648
      %v1805 = vsel %vm1803, %v1804, %v1802
      %v1806 = vrsqrt.pop %v1754
      %v1807 = vmul.f32 %v1754, %v1806
      %vm1808 = vcmp.eq.f32.partialorder %v1754, inf
      %v1809 = vsel %vm1808, %v1754, %v1807
      %vm1810 = vcmp.eq.f32.partialorder %v1754, 0.0
      %v1811 = vand.u32 %v1754, 2147483648
      %v1812 = vsel %vm1810, %v1811, %v1809
      %v1813 = vrsqrt.pop %v1755
      %v1814 = vmul.f32 %v1755, %v1813
      %vm1815 = vcmp.eq.f32.partialorder %v1755, inf
      %v1816 = vsel %vm1815, %v1755, %v1814
      %vm1817 = vcmp.eq.f32.partialorder %v1755, 0.0
      %v1818 = vand.u32 %v1755, 2147483648
      %v1819 = vsel %vm1817, %v1818, %v1816
      %v1820 = vrsqrt.pop %v1756
      %v1821 = vmul.f32 %v1756, %v1820
      %vm1822 = vcmp.eq.f32.partialorder %v1756, inf
      %v1823 = vsel %vm1822, %v1756, %v1821
      %vm1824 = vcmp.eq.f32.partialorder %v1756, 0.0
      %v1825 = vand.u32 %v1756, 2147483648
      %v1826 = vsel %vm1824, %v1825, %v1823
      %v1827 = vrsqrt.pop %v1757
      %v1828 = vmul.f32 %v1757, %v1827
      %vm1829 = vcmp.eq.f32.partialorder %v1757, inf
      %v1830 = vsel %vm1829, %v1757, %v1828
      %vm1831 = vcmp.eq.f32.partialorder %v1757, 0.0
      %v1832 = vand.u32 %v1757, 2147483648
      %v1833 = vsel %vm1831, %v1832, %v1830
      %v1834 = vrsqrt.pop %v1758
      %v1835 = vmul.f32 %v1758, %v1834
      %vm1836 = vcmp.eq.f32.partialorder %v1758, inf
      %v1837 = vsel %vm1836, %v1758, %v1835
      %vm1838 = vcmp.eq.f32.partialorder %v1758, 0.0
      %v1839 = vand.u32 %v1758, 2147483648
      %v1840 = vsel %vm1838, %v1839, %v1837
      %v1841 = vrsqrt.pop %v1759
      %v1842 = vmul.f32 %v1759, %v1841
      %vm1843 = vcmp.eq.f32.partialorder %v1759, inf
      %v1844 = vsel %vm1843, %v1759, %v1842
      %vm1845 = vcmp.eq.f32.partialorder %v1759, 0.0
      %v1846 = vand.u32 %v1759, 2147483648
      %v1847 = vsel %vm1845, %v1846, %v1844
      %v1848 = vrsqrt.pop %v1760
      %v1849 = vmul.f32 %v1760, %v1848
      %vm1850 = vcmp.eq.f32.partialorder %v1760, inf
      %v1851 = vsel %vm1850, %v1760, %v1849
      %vm1852 = vcmp.eq.f32.partialorder %v1760, 0.0
      %v1853 = vand.u32 %v1760, 2147483648
      %v1854 = vsel %vm1852, %v1853, %v1851
      %v1855 = vrsqrt.pop %v1761
      %v1856 = vmul.f32 %v1761, %v1855
      %vm1857 = vcmp.eq.f32.partialorder %v1761, inf
      %v1858 = vsel %vm1857, %v1761, %v1856
      %vm1859 = vcmp.eq.f32.partialorder %v1761, 0.0
      %v1860 = vand.u32 %v1761, 2147483648
      %v1861 = vsel %vm1859, %v1860, %v1858
      %v1862 = vrsqrt.pop %v1762
      %v1863 = vmul.f32 %v1762, %v1862
      %vm1864 = vcmp.eq.f32.partialorder %v1762, inf
      %v1865 = vsel %vm1864, %v1762, %v1863
      %vm1866 = vcmp.eq.f32.partialorder %v1762, 0.0
      %v1867 = vand.u32 %v1762, 2147483648
      %v1868 = vsel %vm1866, %v1867, %v1865
      %v1869 = vrsqrt.pop %v1763
      %v1870 = vmul.f32 %v1763, %v1869
      %vm1871 = vcmp.eq.f32.partialorder %v1763, inf
      %v1872 = vsel %vm1871, %v1763, %v1870
      %vm1873 = vcmp.eq.f32.partialorder %v1763, 0.0
      %v1874 = vand.u32 %v1763, 2147483648
      %v1875 = vsel %vm1873, %v1874, %v1872
      %v1876 = vsub.f32 5.0, %v1770
      %v1877 = vsub.f32 5.0, %v1777
      %v1878 = vsub.f32 5.0, %v1784
      %v1879 = vsub.f32 5.0, %v1791
      %v1880 = vsub.f32 5.0, %v1798
      %v1881 = vsub.f32 5.0, %v1805
      %v1882 = vsub.f32 5.0, %v1812
      %v1883 = vsub.f32 5.0, %v1819
      %v1884 = vsub.f32 5.0, %v1826
      %v1885 = vsub.f32 5.0, %v1833
      %v1886 = vsub.f32 5.0, %v1840
      %v1887 = vsub.f32 5.0, %v1847
      %v1888 = vsub.f32 5.0, %v1854
      %v1889 = vsub.f32 5.0, %v1861
      %v1890 = vsub.f32 5.0, %v1868
      %v1891 = vsub.f32 5.0, %v1875
      %v1892 = vmax.f32 %v1876, 0.0
      %v1893 = vmax.f32 %v1877, 0.0
      %v1894 = vmax.f32 %v1878, 0.0
      %v1895 = vmax.f32 %v1879, 0.0
      %v1896 = vmax.f32 %v1880, 0.0
      %v1897 = vmax.f32 %v1881, 0.0
      %v1898 = vmax.f32 %v1882, 0.0
      %v1899 = vmax.f32 %v1883, 0.0
      %v1900 = vmax.f32 %v1884, 0.0
      %v1901 = vmax.f32 %v1885, 0.0
      %v1902 = vmax.f32 %v1886, 0.0
      %v1903 = vmax.f32 %v1887, 0.0
      %v1904 = vmax.f32 %v1888, 0.0
      %v1905 = vmax.f32 %v1889, 0.0
      %v1906 = vmax.f32 %v1890, 0.0
      %v1907 = vmax.f32 %v1891, 0.0
      %v1908 = vmul.f32 %v1892, %v1892
      %v1909 = vmul.f32 %v1893, %v1893
      %v1910 = vmul.f32 %v1894, %v1894
      %v1911 = vmul.f32 %v1895, %v1895
      %v1912 = vmul.f32 %v1896, %v1896
      %v1913 = vmul.f32 %v1897, %v1897
      %v1914 = vmul.f32 %v1898, %v1898
      %v1915 = vmul.f32 %v1899, %v1899
      %v1916 = vmul.f32 %v1900, %v1900
      %v1917 = vmul.f32 %v1901, %v1901
      %v1918 = vmul.f32 %v1902, %v1902
      %v1919 = vmul.f32 %v1903, %v1903
      %v1920 = vmul.f32 %v1904, %v1904
      %v1921 = vmul.f32 %v1905, %v1905
      %v1922 = vmul.f32 %v1906, %v1906
      %v1923 = vmul.f32 %v1907, %v1907
      %v1924 = vlaneseq
      %v1925 = vand.u32 %v1924, 127
      %vm1926 = vcmp.gt.s32.totalorder %v1925, %v167
      %vm1927 = vcmp.gt.s32.totalorder %v1925, %v168
      %vm1928 = vcmp.gt.s32.totalorder %v1925, %v169
      %vm1929 = vcmp.gt.s32.totalorder %v1925, %v170
      %vm1930 = vcmp.gt.s32.totalorder %v1925, %v171
      %vm1931 = vcmp.gt.s32.totalorder %v1925, %v172
      %vm1932 = vcmp.gt.s32.totalorder %v1925, %v173
      %vm1933 = vcmp.gt.s32.totalorder %v1925, %v174
      %vm1934 = vcmp.gt.s32.totalorder %v1925, %v175
      %vm1935 = vcmp.gt.s32.totalorder %v1925, %v176
      %vm1936 = vcmp.gt.s32.totalorder %v1925, %v177
      %vm1937 = vcmp.gt.s32.totalorder %v1925, %v178
      %vm1938 = vcmp.gt.s32.totalorder %v1925, %v179
      %vm1939 = vcmp.gt.s32.totalorder %v1925, %v180
      %vm1940 = vcmp.gt.s32.totalorder %v1925, %v181
      %vm1941 = vcmp.gt.s32.totalorder %v1925, %v182
      %v1942 = vsel %vm1926, 1, 0
      %v1943 = vsel %vm1927, 1, 0
      %v1944 = vsel %vm1928, 1, 0
      %v1945 = vsel %vm1929, 1, 0
      %v1946 = vsel %vm1930, 1, 0
      %v1947 = vsel %vm1931, 1, 0
      %v1948 = vsel %vm1932, 1, 0
      %v1949 = vsel %vm1933, 1, 0
      %v1950 = vsel %vm1934, 1, 0
      %v1951 = vsel %vm1935, 1, 0
      %v1952 = vsel %vm1936, 1, 0
      %v1953 = vsel %vm1937, 1, 0
      %v1954 = vsel %vm1938, 1, 0
      %v1955 = vsel %vm1939, 1, 0
      %v1956 = vsel %vm1940, 1, 0
      %v1957 = vsel %vm1941, 1, 0
      %v1958 = vcvt.s32.f32 %v1942
      %v1959 = vcvt.s32.f32 %v1943
      %v1960 = vcvt.s32.f32 %v1944
      %v1961 = vcvt.s32.f32 %v1945
      %v1962 = vcvt.s32.f32 %v1946
      %v1963 = vcvt.s32.f32 %v1947
      %v1964 = vcvt.s32.f32 %v1948
      %v1965 = vcvt.s32.f32 %v1949
      %v1966 = vcvt.s32.f32 %v1950
      %v1967 = vcvt.s32.f32 %v1951
      %v1968 = vcvt.s32.f32 %v1952
      %v1969 = vcvt.s32.f32 %v1953
      %v1970 = vcvt.s32.f32 %v1954
      %v1971 = vcvt.s32.f32 %v1955
      %v1972 = vcvt.s32.f32 %v1956
      %v1973 = vcvt.s32.f32 %v1957
      %v1974 = vmul.f32 %v1908, %v1958
      %v1975 = vmul.f32 %v1909, %v1959
      %v1976 = vmul.f32 %v1910, %v1960
      %v1977 = vmul.f32 %v1911, %v1961
      %v1978 = vmul.f32 %v1912, %v1962
      %v1979 = vmul.f32 %v1913, %v1963
      %v1980 = vmul.f32 %v1914, %v1964
      %v1981 = vmul.f32 %v1915, %v1965
      %v1982 = vmul.f32 %v1916, %v1966
      %v1983 = vmul.f32 %v1917, %v1967
      %v1984 = vmul.f32 %v1918, %v1968
      %v1985 = vmul.f32 %v1919, %v1969
      %v1986 = vmul.f32 %v1920, %v1970
      %v1987 = vmul.f32 %v1921, %v1971
      %v1988 = vmul.f32 %v1922, %v1972
      %v1989 = vmul.f32 %v1923, %v1973
      %1990 = vmatprep.subr.mxu0 0.0
      %1991 = vmatpush1.msra.mxu0 %v1659
      %1992 = vmatprep.subr.mxu0 0.0
      %1993 = vmatpush1.msra.mxu0 %v1660
      %1994 = vmatprep.subr.mxu0 0.0
      %1995 = vmatpush1.msra.mxu0 %v1661
      %1996 = vmatprep.subr.mxu0 0.0
      %1997 = vmatpush1.msra.mxu0 %v1662
      %1998 = vmatprep.subr.mxu0 0.0
      %1999 = vmatpush1.msra.mxu0 %v1663
      %2000 = vmatprep.subr.mxu0 0.0
      %2001 = vmatpush1.msra.mxu0 %v1664
      %2002 = vmatprep.subr.mxu0 0.0
      %2003 = vmatpush1.msra.mxu0 %v1665
      %2004 = vmatprep.subr.mxu0 0.0
      %2005 = vmatpush1.msra.mxu0 %v1666
      %2006 = vmatprep.subr.mxu0 0.0
      %2007 = vmatpush1.msra.mxu0 %v1667
      %2008 = vmatprep.subr.mxu0 0.0
      %2009 = vmatpush1.msra.mxu0 %v1668
      %2010 = vmatprep.subr.mxu0 0.0
      %2011 = vmatpush1.msra.mxu0 %v1669
      %2012 = vmatprep.subr.mxu0 0.0
      %2013 = vmatpush1.msra.mxu0 %v1670
      %2014 = vmatprep.subr.mxu0 0.0
      %2015 = vmatpush1.msra.mxu0 %v1671
      %2016 = vmatprep.subr.mxu0 0.0
      %2017 = vmatpush1.msra.mxu0 %v1672
      %2018 = vmatprep.subr.mxu0 0.0
      %2019 = vmatpush1.msra.mxu0 %v1673
      %2020 = vmatprep.subr.mxu0 0.0
      %2021 = vmatpush1.msra.mxu0 %v1674
      %2022 = vmatprep.subr.mxu0 0.0
      %2023 = vmatpush1.msra.mxu0 0.0
      %2024 = vmatprep.subr.mxu0 0.0
      %2025 = vmatpush1.msra.mxu0 0.0
      %2026 = vmatprep.subr.mxu0 0.0
      %2027 = vmatpush1.msra.mxu0 0.0
      %2028 = vmatprep.subr.mxu0 0.0
      %2029 = vmatpush1.msra.mxu0 0.0
      %2030 = vmatprep.subr.mxu0 0.0
      %2031 = vmatpush1.msra.mxu0 0.0
      %2032 = vmatprep.subr.mxu0 0.0
      %2033 = vmatpush1.msra.mxu0 0.0
      %2034 = vmatprep.subr.mxu0 0.0
      %2035 = vmatpush1.msra.mxu0 0.0
      %2036 = vmatprep.subr.mxu0 0.0
      %2037 = vmatpush1.msra.mxu0 0.0
      %2038 = vmatprep.subr.mxu0 0.0
      %2039 = vmatpush1.msra.mxu0 0.0
      %2040 = vmatprep.subr.mxu0 0.0
      %2041 = vmatpush1.msra.mxu0 0.0
      %2042 = vmatprep.subr.mxu0 0.0
      %2043 = vmatpush1.msra.mxu0 0.0
      %2044 = vmatprep.subr.mxu0 0.0
      %2045 = vmatpush1.msra.mxu0 0.0
      %2046 = vmatprep.subr.mxu0 0.0
      %2047 = vmatpush1.msra.mxu0 0.0
      %2048 = vmatprep.subr.mxu0 0.0
      %2049 = vmatpush1.msra.mxu0 0.0
      %2050 = vmatprep.subr.mxu0 0.0
      %2051 = vmatpush1.msra.mxu0 0.0
      %2052 = vmatprep.subr.mxu0 0.0
      %2053 = vmatpush1.msra.mxu0 0.0
      %2054 = vmatprep.mubr.f32.mxu0 0.0
      %2055 = vmatmul.mubr.f32.gmra.mrb[0].mxu0 %v1974
      %v2056 = vpop.f32.mrb[0].mxu0
      %v2057 = vadd.f32 0.0, %v2056
      %v2058 = vpop.f32.mrb[0].mxu0
      %2059 = vmatprep.mubr.f32.mxu0 0.0
      %2060 = vmatmul.mubr.f32.gmra.mrb[0].mxu0 %v1975
      %v2061 = vpop.f32.mrb[0].mxu0
      %v2062 = vadd.f32 0.0, %v2061
      %v2063 = vpop.f32.mrb[0].mxu0
      %2064 = vmatprep.mubr.f32.mxu0 0.0
      %2065 = vmatmul.mubr.f32.gmra.mrb[0].mxu0 %v1976
      %v2066 = vpop.f32.mrb[0].mxu0
      %v2067 = vadd.f32 0.0, %v2066
      %v2068 = vpop.f32.mrb[0].mxu0
      %2069 = vmatprep.mubr.f32.mxu0 0.0
      %2070 = vmatmul.mubr.f32.gmra.mrb[0].mxu0 %v1977
      %v2071 = vpop.f32.mrb[0].mxu0
      %v2072 = vadd.f32 0.0, %v2071
      %v2073 = vpop.f32.mrb[0].mxu0
      %2074 = vmatprep.mubr.f32.mxu0 0.0
      %2075 = vmatmul.mubr.f32.gmra.mrb[0].mxu0 %v1978
      %v2076 = vpop.f32.mrb[0].mxu0
      %v2077 = vadd.f32 0.0, %v2076
      %v2078 = vpop.f32.mrb[0].mxu0
      %2079 = vmatprep.mubr.f32.mxu0 0.0
      %2080 = vmatmul.mubr.f32.gmra.mrb[0].mxu0 %v1979
      %v2081 = vpop.f32.mrb[0].mxu0
      %v2082 = vadd.f32 0.0, %v2081
      %v2083 = vpop.f32.mrb[0].mxu0
      %2084 = vmatprep.mubr.f32.mxu0 0.0
      %2085 = vmatmul.mubr.f32.gmra.mrb[0].mxu0 %v1980
      %v2086 = vpop.f32.mrb[0].mxu0
      %v2087 = vadd.f32 0.0, %v2086
      %v2088 = vpop.f32.mrb[0].mxu0
      %2089 = vmatprep.mubr.f32.mxu0 0.0
      %2090 = vmatmul.mubr.f32.gmra.mrb[0].mxu0 %v1981
      %v2091 = vpop.f32.mrb[0].mxu0
      %v2092 = vadd.f32 0.0, %v2091
      %v2093 = vpop.f32.mrb[0].mxu0
      %2094 = vmatprep.mubr.f32.mxu0 0.0
      %2095 = vmatmul.mubr.f32.gmra.mrb[0].mxu0 %v1982
      %v2096 = vpop.f32.mrb[0].mxu0
      %v2097 = vadd.f32 0.0, %v2096
      %v2098 = vpop.f32.mrb[0].mxu0
      %2099 = vmatprep.mubr.f32.mxu0 0.0
      %2100 = vmatmul.mubr.f32.gmra.mrb[0].mxu0 %v1983
      %v2101 = vpop.f32.mrb[0].mxu0
      %v2102 = vadd.f32 0.0, %v2101
      %v2103 = vpop.f32.mrb[0].mxu0
      %2104 = vmatprep.mubr.f32.mxu0 0.0
      %2105 = vmatmul.mubr.f32.gmra.mrb[0].mxu0 %v1984
      %v2106 = vpop.f32.mrb[0].mxu0
      %v2107 = vadd.f32 0.0, %v2106
      %v2108 = vpop.f32.mrb[0].mxu0
      %2109 = vmatprep.mubr.f32.mxu0 0.0
      %2110 = vmatmul.mubr.f32.gmra.mrb[0].mxu0 %v1985
      %v2111 = vpop.f32.mrb[0].mxu0
      %v2112 = vadd.f32 0.0, %v2111
      %v2113 = vpop.f32.mrb[0].mxu0
      %2114 = vmatprep.mubr.f32.mxu0 0.0
      %2115 = vmatmul.mubr.f32.gmra.mrb[0].mxu0 %v1986
      %v2116 = vpop.f32.mrb[0].mxu0
      %v2117 = vadd.f32 0.0, %v2116
      %v2118 = vpop.f32.mrb[0].mxu0
      %2119 = vmatprep.mubr.f32.mxu0 0.0
      %2120 = vmatmul.mubr.f32.gmra.mrb[0].mxu0 %v1987
      %v2121 = vpop.f32.mrb[0].mxu0
      %v2122 = vadd.f32 0.0, %v2121
      %v2123 = vpop.f32.mrb[0].mxu0
      %2124 = vmatprep.mubr.f32.mxu0 0.0
      %2125 = vmatmul.mubr.f32.gmra.mrb[0].mxu0 %v1988
      %v2126 = vpop.f32.mrb[0].mxu0
      %v2127 = vadd.f32 0.0, %v2126
      %v2128 = vpop.f32.mrb[0].mxu0
      %2129 = vmatprep.mubr.f32.mxu0 0.0
      %2130 = vmatmul.mubr.f32.gmra.mrb[0].mxu0 %v1989
      %v2131 = vpop.f32.mrb[0].mxu0
      %v2132 = vadd.f32 0.0, %v2131
      %v2133 = vpop.f32.mrb[0].mxu0
      %2134 = vdwg.mxu0
      %v2135 = vmul.f32 %v2057, %v1659
      %v2136 = vmul.f32 %v2062, %v1660
      %v2137 = vmul.f32 %v2067, %v1661
      %v2138 = vmul.f32 %v2072, %v1662
      %v2139 = vmul.f32 %v2077, %v1663
      %v2140 = vmul.f32 %v2082, %v1664
      %v2141 = vmul.f32 %v2087, %v1665
      %v2142 = vmul.f32 %v2092, %v1666
      %v2143 = vmul.f32 %v2097, %v1667
      %v2144 = vmul.f32 %v2102, %v1668
      %v2145 = vmul.f32 %v2107, %v1669
      %v2146 = vmul.f32 %v2112, %v1670
      %v2147 = vmul.f32 %v2117, %v1671
      %v2148 = vmul.f32 %v2122, %v1672
      %v2149 = vmul.f32 %v2127, %v1673
      %v2150 = vmul.f32 %v2132, %v1674
      %vm2151 = vcmask 7168
      %v2152 = vsel %vm2151, %v2135, 0.0
      %v2153 = vsel %vm2151, %v2136, 0.0
      %v2154 = vadd.f32 %v2152, %v2153
      %v2155 = vsel %vm2151, %v2137, 0.0
      %v2156 = vadd.f32 %v2154, %v2155
      %v2157 = vsel %vm2151, %v2138, 0.0
      %v2158 = vadd.f32 %v2156, %v2157
      %v2159 = vsel %vm2151, %v2139, 0.0
      %v2160 = vadd.f32 %v2158, %v2159
      %v2161 = vsel %vm2151, %v2140, 0.0
      %v2162 = vadd.f32 %v2160, %v2161
      %v2163 = vsel %vm2151, %v2141, 0.0
      %v2164 = vadd.f32 %v2162, %v2163
      %v2165 = vsel %vm2151, %v2142, 0.0
      %v2166 = vadd.f32 %v2164, %v2165
      %v2167 = vsel %vm2151, %v2143, 0.0
      %v2168 = vadd.f32 %v2166, %v2167
      %v2169 = vsel %vm2151, %v2144, 0.0
      %v2170 = vadd.f32 %v2168, %v2169
      %v2171 = vsel %vm2151, %v2145, 0.0
      %v2172 = vadd.f32 %v2170, %v2171
      %v2173 = vsel %vm2151, %v2146, 0.0
      %v2174 = vadd.f32 %v2172, %v2173
      %v2175 = vsel %vm2151, %v2147, 0.0
      %v2176 = vadd.f32 %v2174, %v2175
      %v2177 = vsel %vm2151, %v2148, 0.0
      %v2178 = vadd.f32 %v2176, %v2177
      %v2179 = vsel %vm2151, %v2149, 0.0
      %v2180 = vadd.f32 %v2178, %v2179
      %v2181 = vsel %vm2151, %v2150, 0.0
      %v2182 = vadd.f32 %v2180, %v2181
      %v2183 = vrot.slane %v2182, 4
      %v2184 = vadd.f32 %v2182, %v2183
      %v2185 = vrot.slane %v2184, 2
      %v2186 = vadd.f32 %v2184, %v2185
      %v2187 = vrot.slane %v2186, 1
      %v2188 = vadd.f32 %v2186, %v2187
      %v2189 = vsub.f32 %v1695, 1.0
      %v2190 = vmax.f32 %v2189, 1.0
      %v2191 = vrcp.pop %v2190
      %v2192 = vmul.f32 %v2188, %v2191
      %v2193 = vadd.f32 %v1626, %v2192
      %v2194 = vmax.f32 %v1695, 1.0
      %v2195 = vrcp.pop %v2194
      %v2196 = vmul.f32 %v2193, %v2195
      %vm2197 = vcmask 0
      %2198 = vst.msk [vmem:[%s156] sm:$0x1] %vm2197, %v2196
      %p2199 = scmp.lt.s32.totalorder %s13, 1
      %s2200 = scalar_select %p2199, %s13, 1
      %s2201 = scalar_lea.vmem %s2, %s2200
      // Predicated region
      $region29: #{_lambda_.1} parent=27 // pred_check
        %p2202 = pneg %p83
      $region30: #{_lambda_.1} parent=27 // pred_check_branch
        %2204 = sbr.rel (%p2202) target = $region32
      $region31: #{_lambda_.1} parent=27 // pred_region
        _
      $region32: #{_lambda_.1} parent=27 // pred_fallthru
        _
    $region28: #{_lambda_.1} parent=5 // pred_fallthru
      _
    %p2205 = scmp.le.s32.totalorder 2, %s8
    // Predicated region
    $region33: #{_lambda_.1} parent=5 // pred_check
      %p2206 = pneg %p2205
    $region34: #{_lambda_.1} parent=5 // pred_check_branch
      %2208 = sbr.rel (%p2206) target = $region36
    $region35: #{_lambda_.1} parent=5 // pred_region
      %s2209 = ssub.s32 %s8, 2
      // Predicated region
      $region37: #{_lambda_.1} parent=35 // pred_check
        %p2210 = pneg %p89
      $region38: #{_lambda_.1} parent=35 // pred_check_branch
        %2212 = sbr.rel (%p2210) target = $region40
      $region39: #{_lambda_.1} parent=35 // pred_region
        %p2213 = scmp.lt.s32.totalorder %s14, 1
        %s2214 = scalar_select %p2213, %s14, 1
        %s2215 = scalar_lea.vmem %s2, %s2214
      $region40: #{_lambda_.1} parent=35 // pred_fallthru
        _
    $region36: #{_lambda_.1} parent=5 // pred_fallthru
      _
  $region6: #{_lambda_.1} parent=0 // loop_footer
    %s12 = sadd.s32 1, %s8
  $region7: #{_lambda_.1} parent=0 // loop_footer_branch
    %7 = sbr.rel target = $region3
  $region8: #{_lambda_.1} parent=0 // loop_exit
    _

</llo_original>
